<compile_context>
chip_gen: v7x
topology: tpu7x:2x2x1
jax: 0.10.0
libtpu: 0.0.40
codegen_flags: <defaults>
</compile_context>

<pallas_src>
import functools
import math

import jax
import jax.numpy as jnp
from jax import lax
from jax.experimental import pallas as pl
from jax.experimental.pallas import tpu as pltpu


def _gelu_f32(h):
    # exact GELU (erf formulation) == torch.nn.GELU default
    return 0.5 * h * (1.0 + lax.erf(h * (1.0 / math.sqrt(2.0))))


def _dropout_f32(v, drop_p):
    bits = pltpu.bitcast(pltpu.prng_random_bits(v.shape), jnp.uint32)
    u = lax.shift_right_logical(bits, jnp.uint32(9)).astype(jnp.float32)
    u = u * (1.0 / float(1 << 23))  # uniform in [0, 1)
    return jnp.where(u >= drop_p, v * (1.0 / (1.0 - drop_p)), 0.0)


def _mlp_kernel(seed_ref, x_ref, w1_ref, b1_ref, w2_ref, b2_ref, o_ref, acc_ref,
                *, drop_p, train):
    j = pl.program_id(1)
    nj = pl.num_programs(1)

    @pl.when(j == 0)
    def _init():
        acc_ref[...] = jnp.zeros_like(acc_ref)

    # fc1 (+bias): operands stay in their storage dtype (bf16 in the production
    # config) -> native MXU rate; accumulate in f32.
    h = jnp.dot(x_ref[...], w1_ref[...], preferred_element_type=jnp.float32)
    h = h + b1_ref[...].astype(jnp.float32)
    h = _gelu_f32(h)

    if train:
        # one PRNG stream per (row-tile, hidden-tile) grid step
        pltpu.prng_seed(seed_ref[0] + pl.program_id(0) * nj + j)
        h = _dropout_f32(h, drop_p)

    # fc2 partial product (over this hidden tile), accumulated in VMEM f32.
    acc_ref[...] += jnp.dot(h.astype(w2_ref.dtype), w2_ref[...],
                            preferred_element_type=jnp.float32)

    @pl.when(j == nj - 1)
    def _finalize():
        y = acc_ref[...] + b2_ref[...].astype(jnp.float32)
        if train:
            # distinct stream for the output dropout of this row tile
            pltpu.prng_seed(seed_ref[0] + pl.num_programs(0) * nj + pl.program_id(0))
            y = _dropout_f32(y, drop_p)
        o_ref[...] = y.astype(o_ref.dtype)


def prepare_mlp_params(w1, b1, w2, b2, *, param_dtype=jnp.bfloat16):
    """One-time conversion of PyTorch nn.Linear params (weight layout (out,in))
    into kernel layout: (in,out) weights in the matmul dtype, (1,out) f32 biases.
    Call this at parameter-load time, not per forward call."""
    w1t = jnp.asarray(w1).T.astype(param_dtype)
    w2t = jnp.asarray(w2).T.astype(param_dtype)
    b1r = jnp.asarray(b1, jnp.float32).reshape(1, -1)
    b2r = jnp.asarray(b2, jnp.float32).reshape(1, -1)
    return w1t, b1r, w2t, b2r


# Lazily probed: does this jax build accept pl.Buffered(1) (single-buffered
# grid-constant weights) inside a pallas_call BlockSpec?
_SINGLE_BUFFER_OK = None


def mlp_pallas(x, w1t, b1r, w2t, b2r, *, drop_p=0.1, train=False, seed=0,
               tm=256, th=None):
    """x: (B, N, Din); params as returned by prepare_mlp_params.
    Returns (B, N, Dout) in x.dtype (dropout is identity when train=False)."""
    global _SINGLE_BUFFER_OK

    B, N, Din = x.shape
    H = w1t.shape[1]
    Dout = w2t.shape[1]
    assert w1t.shape == (Din, H) and w2t.shape == (H, Dout)
    assert b1r.shape == (1, H) and b2r.shape == (1, Dout)
    if train and not (0.0 <= drop_p < 1.0):
        raise ValueError(f"drop_p must be in [0, 1) in train mode, got {drop_p}")

    out_dtype = x.dtype
    M = B * N

    # Row tiling: fixed tile (multiple of 8); rows are zero-padded up to it.
    if tm >= M:
        tm = M
        m_pad = M
    else:
        assert tm % 8 == 0, "tm must be a multiple of 8 (sublane tiling)"
        m_pad = pl.cdiv(M, tm) * tm

    # Optional hidden-dim tiling for VMEM-tight parts (v7x / very large MLPs).
    if th is None or th >= H:
        th = H
    else:
        assert H % th == 0 and th % 128 == 0, "th must divide H and be a multiple of 128"
    h_tiled = th != H

    x2d = x.reshape(M, Din).astype(w1t.dtype)
    if m_pad != M:
        x2d = jnp.pad(x2d, ((0, m_pad - M), (0, 0)))

    seed_arr = jnp.array([seed], dtype=jnp.int32)
    grid = (m_pad // tm, H // th)

    kernel = functools.partial(_mlp_kernel, drop_p=float(drop_p), train=bool(train))

    bytes_accessed = (x2d.size * x2d.dtype.itemsize
                      + w1t.size * w1t.dtype.itemsize
                      + w2t.size * w2t.dtype.itemsize
                      + (b1r.size + b2r.size) * 4
                      + m_pad * Dout * jnp.dtype(out_dtype).itemsize)
    cost = pl.CostEstimate(
        flops=2 * m_pad * H * (Din + Dout),
        transcendentals=m_pad * H,            # erf
        bytes_accessed=int(bytes_accessed))

    def run(single_buffer_weights):
        def wspec(shape, index_map, grid_constant):
            # Grid-constant blocks don't need double buffering; halving their
            # VMEM footprint matters when the full weights stay resident.
            if single_buffer_weights and grid_constant:
                return pl.BlockSpec(shape, index_map, pipeline_mode=pl.Buffered(1))
            return pl.BlockSpec(shape, index_map)

        in_specs = [
            pl.BlockSpec((tm, Din), lambda i, j, s: (i, 0)),          # x tile
            wspec((Din, th), lambda i, j, s: (0, j), not h_tiled),    # w1t
            wspec((1, th), lambda i, j, s: (0, j), not h_tiled),      # b1
            wspec((th, Dout), lambda i, j, s: (j, 0), not h_tiled),   # w2t
            wspec((1, Dout), lambda i, j, s: (0, 0), True),           # b2
        ]
        out_specs = pl.BlockSpec((tm, Dout), lambda i, j, s: (i, 0))

        return pl.pallas_call(
            kernel,
            out_shape=jax.ShapeDtypeStruct((m_pad, Dout), out_dtype),
            grid_spec=pltpu.PrefetchScalarGridSpec(
                num_scalar_prefetch=1,
                grid=grid,
                in_specs=in_specs,
                out_specs=out_specs,
                scratch_shapes=[pltpu.VMEM((tm, Dout), jnp.float32)],
            ),
            compiler_params=pltpu.CompilerParams(
                dimension_semantics=("parallel", "arbitrary"),
                vmem_limit_bytes=64 * 1024 * 1024),
            cost_estimate=cost,
        )(seed_arr, x2d, w1t, b1r, w2t, b2r)

    if _SINGLE_BUFFER_OK is None:
        try:
            out2d = run(True)
            out2d.block_until_ready()
            _SINGLE_BUFFER_OK = True
        except Exception:
            # Fallback: default (double) buffering for the weight blocks.
            _SINGLE_BUFFER_OK = False
            out2d = run(False)
    else:
        out2d = run(_SINGLE_BUFFER_OK)

    if m_pad != M:
        out2d = out2d[:M]
    return out2d.reshape(B, N, Dout)


def mlp_ref(x, w1, b1, w2, b2):
    """Pure-JAX f32 reference (eval mode: dropout = identity). PyTorch layout."""
    h = jnp.einsum("bnd,hd->bnh", x, w1) + b1
    h = 0.5 * h * (1.0 + lax.erf(h / jnp.sqrt(2.0)))
    return jnp.einsum("bnh,oh->bno", h, w2) + b2


if __name__ == "__main__":
    # Small shapes consistent with the ViT MLP: tokens (B, N, D), hidden = 4*D.
    B, N, Din = 2, 8, 64
    H = 4 * Din          # 256 -> lets us exercise the tiled-H (th=128) path
    Dout = Din

    key = jax.random.PRNGKey(0)
    kx, k1, k2, k3, k4 = jax.random.split(key, 5)
    x = jax.random.normal(kx, (B, N, Din), dtype=jnp.float32)

    # PyTorch nn.Linear layout: weight (out, in), bias (out,)
    bound1 = 1.0 / math.sqrt(Din)
    w1 = jax.random.uniform(k1, (H, Din), jnp.float32, -bound1, bound1)
    b1 = jax.random.uniform(k2, (H,), jnp.float32, -bound1, bound1)
    bound2 = 1.0 / math.sqrt(H)
    w2 = jax.random.uniform(k3, (Dout, H), jnp.float32, -bound2, bound2)
    b2 = jax.random.uniform(k4, (Dout,), jnp.float32, -bound2, bound2)

    ref = mlp_ref(x, w1, b1, w2, b2)

    # 1) f32 matmul path, full H, multi-step row grid (tm=8 -> 2 steps): tight check.
    p32 = prepare_mlp_params(w1, b1, w2, b2, param_dtype=jnp.float32)
    out32 = jax.block_until_ready(mlp_pallas(x, *p32, drop_p=0.1, train=False, tm=8))
    assert out32.shape == (B, N, Dout)
    assert jnp.allclose(out32, ref, atol=1e-4, rtol=1e-4), "f32 path mismatch vs reference"

    # 2) production config: bf16 MXU operands + tiled hidden dim (th=128 -> 2 steps).
    pbf = prepare_mlp_params(w1, b1, w2, b2, param_dtype=jnp.bfloat16)
    outbf = jax.block_until_ready(
        mlp_pallas(x, *pbf, drop_p=0.1, train=False, tm=8, th=128))
    assert outbf.shape == (B, N, Dout)
    assert jnp.allclose(outbf, ref, atol=5e-2, rtol=5e-2), "bf16 path mismatch vs reference"

    print("KERNEL_OK")
</pallas_src>

<mosaic_0001>
module attributes {stable_mosaic.version = 11 : i64} {
  func.func @_mlp_kernel(%arg0: i32, %arg1: i32, %arg2: memref<1xi32, #tpu.memory_space<smem>>, %arg3: memref<8x64xf32, #tpu.memory_space<vmem>>, %arg4: memref<64x256xf32, #tpu.memory_space<vmem>>, %arg5: memref<1x256xf32, #tpu.memory_space<vmem>>, %arg6: memref<256x64xf32, #tpu.memory_space<vmem>>, %arg7: memref<1x64xf32, #tpu.memory_space<vmem>>, %arg8: memref<8x64xf32, #tpu.memory_space<vmem>>, %arg9: memref<8x64xf32, #tpu.memory_space<vmem>>) attributes {dimension_semantics = [#tpu.dimension_semantics<parallel>, #tpu.dimension_semantics<arbitrary>], iteration_bounds = array<i64: 2, 1>, scalar_prefetch = 1 : i64, scratch_operands = 1 : i64, tpu.core_type = #tpu.core_type<tc>, window_params = [{transform_indices = @transform_0, window_bounds = array<i64: 8, 64>}, {pipeline_mode = #tpu.pipeline_mode<synchronous>, transform_indices = @transform_1, window_bounds = array<i64: 64, 256>}, {pipeline_mode = #tpu.pipeline_mode<synchronous>, transform_indices = @transform_2, window_bounds = array<i64: 1, 256>}, {pipeline_mode = #tpu.pipeline_mode<synchronous>, transform_indices = @transform_3, window_bounds = array<i64: 256, 64>}, {pipeline_mode = #tpu.pipeline_mode<synchronous>, transform_indices = @transform_4, window_bounds = array<i64: 1, 64>}, {transform_indices = @transform_5, window_bounds = array<i64: 8, 64>}]} {
    %c0_i32 = arith.constant 0 : i32
    %0 = arith.cmpi eq, %arg1, %c0_i32 : i32
    %1 = arith.extui %0 : i1 to i32
    %c0_i32_0 = arith.constant 0 : i32
    %2 = arith.cmpi ne, %1, %c0_i32_0 : i32
    scf.if %2 {
      %cst_18 = arith.constant 0.000000e+00 : f32
      %25 = vector.broadcast %cst_18 : f32 to vector<8x64xf32>
      %c0_19 = arith.constant 0 : index
      %c0_20 = arith.constant 0 : index
      %26 = vector.load %arg9[%c0_19, %c0_20] : memref<8x64xf32, #tpu.memory_space<vmem>>, vector<8x64xf32>
      tpu.vector_store %arg9[%c0_19, %c0_20], %25 {strides = array<i32>} : memref<8x64xf32, #tpu.memory_space<vmem>>, vector<8x64xf32>,
    } else {
    }
    %c0 = arith.constant 0 : index
    %c0_1 = arith.constant 0 : index
    %3 = vector.load %arg3[%c0, %c0_1] : memref<8x64xf32, #tpu.memory_space<vmem>>, vector<8x64xf32>
    %c0_2 = arith.constant 0 : index
    %c0_3 = arith.constant 0 : index
    %4 = vector.load %arg4[%c0_2, %c0_3] : memref<64x256xf32, #tpu.memory_space<vmem>>, vector<64x256xf32>
    %cst = arith.constant dense<0.000000e+00> : vector<8x256xf32>
    %5 = tpu.matmul %3, %4, %cst {dimension_numbers = #tpu.dot_dimension_numbers<[1], [0], [0], [1], [0, 0, 1, 1], [], []>} : vector<8x64xf32>, vector<64x256xf32>, vector<8x256xf32> -> vector<8x256xf32>
    %c0_4 = arith.constant 0 : index
    %c0_5 = arith.constant 0 : index
    %6 = vector.load %arg5[%c0_4, %c0_5] : memref<1x256xf32, #tpu.memory_space<vmem>>, vector<1x256xf32>
    %7 = vector.broadcast %6 : vector<1x256xf32> to vector<8x256xf32>
    %8 = arith.addf %5, %7 : vector<8x256xf32>
    %cst_6 = arith.constant 5.000000e-01 : f32
    %9 = vector.broadcast %cst_6 : f32 to vector<8x256xf32>
    %10 = arith.mulf %9, %8 : vector<8x256xf32>
    %cst_7 = arith.constant 0.707106769 : f32
    %11 = vector.broadcast %cst_7 : f32 to vector<8x256xf32>
    %12 = arith.mulf %8, %11 : vector<8x256xf32>
    %13 = math.erf %12 : vector<8x256xf32>
    %cst_8 = arith.constant 1.000000e+00 : f32
    %14 = vector.broadcast %cst_8 : f32 to vector<8x256xf32>
    %15 = arith.addf %14, %13 : vector<8x256xf32>
    %16 = arith.mulf %10, %15 : vector<8x256xf32>
    %c0_9 = arith.constant 0 : index
    %c0_10 = arith.constant 0 : index
    %17 = vector.load %arg9[%c0_9, %c0_10] : memref<8x64xf32, #tpu.memory_space<vmem>>, vector<8x64xf32>
    %c0_11 = arith.constant 0 : index
    %c0_12 = arith.constant 0 : index
    %18 = vector.load %arg6[%c0_11, %c0_12] : memref<256x64xf32, #tpu.memory_space<vmem>>, vector<256x64xf32>
    %cst_13 = arith.constant dense<0.000000e+00> : vector<8x64xf32>
    %19 = tpu.matmul %16, %18, %cst_13 {dimension_numbers = #tpu.dot_dimension_numbers<[1], [0], [0], [1], [0, 0, 1, 1], [], []>} : vector<8x256xf32>, vector<256x64xf32>, vector<8x64xf32> -> vector<8x64xf32>
    %20 = arith.addf %17, %19 : vector<8x64xf32>
    %c0_14 = arith.constant 0 : index
    %c0_15 = arith.constant 0 : index
    %21 = vector.load %arg9[%c0_14, %c0_15] : memref<8x64xf32, #tpu.memory_space<vmem>>, vector<8x64xf32>
    tpu.vector_store %arg9[%c0_14, %c0_15], %20 {strides = array<i32>} : memref<8x64xf32, #tpu.memory_space<vmem>>, vector<8x64xf32>,
    %c0_i32_16 = arith.constant 0 : i32
    %22 = arith.cmpi eq, %arg1, %c0_i32_16 : i32
    %23 = arith.extui %22 : i1 to i32
    %c0_i32_17 = arith.constant 0 : i32
    %24 = arith.cmpi ne, %23, %c0_i32_17 : i32
    scf.if %24 {
      %c0_18 = arith.constant 0 : index
      %c0_19 = arith.constant 0 : index
      %25 = vector.load %arg9[%c0_18, %c0_19] : memref<8x64xf32, #tpu.memory_space<vmem>>, vector<8x64xf32>
      %c0_20 = arith.constant 0 : index
      %c0_21 = arith.constant 0 : index
      %26 = vector.load %arg7[%c0_20, %c0_21] : memref<1x64xf32, #tpu.memory_space<vmem>>, vector<1x64xf32>
      %27 = vector.broadcast %26 : vector<1x64xf32> to vector<8x64xf32>
      %28 = arith.addf %25, %27 : vector<8x64xf32>
      %c0_22 = arith.constant 0 : index
      %c0_23 = arith.constant 0 : index
      %29 = vector.load %arg8[%c0_22, %c0_23] : memref<8x64xf32, #tpu.memory_space<vmem>>, vector<8x64xf32>
      tpu.vector_store %arg8[%c0_22, %c0_23], %28 {strides = array<i32>} : memref<8x64xf32, #tpu.memory_space<vmem>>, vector<8x64xf32>,
    } else {
    }
    return
  }
  func.func @transform_0(%arg0: i32, %arg1: i32, %arg2: memref<1xi32, #tpu.memory_space<smem>>) -> (i32, i32) {
    %c0_i32 = arith.constant 0 : i32
    %c0_i32_0 = arith.constant 0 : i32
    return %arg0, %c0_i32 : i32, i32
  }
  func.func @transform_1(%arg0: i32, %arg1: i32, %arg2: memref<1xi32, #tpu.memory_space<smem>>) -> (i32, i32) {
    %c0_i32 = arith.constant 0 : i32
    %c0_i32_0 = arith.constant 0 : i32
    return %c0_i32, %arg1 : i32, i32
  }
  func.func @transform_2(%arg0: i32, %arg1: i32, %arg2: memref<1xi32, #tpu.memory_space<smem>>) -> (i32, i32) {
    %c0_i32 = arith.constant 0 : i32
    %c0_i32_0 = arith.constant 0 : i32
    return %c0_i32, %arg1 : i32, i32
  }
  func.func @transform_3(%arg0: i32, %arg1: i32, %arg2: memref<1xi32, #tpu.memory_space<smem>>) -> (i32, i32) {
    %c0_i32 = arith.constant 0 : i32
    %c0_i32_0 = arith.constant 0 : i32
    return %arg1, %c0_i32 : i32, i32
  }
  func.func @transform_4(%arg0: i32, %arg1: i32, %arg2: memref<1xi32, #tpu.memory_space<smem>>) -> (i32, i32) {
    %c0_i32 = arith.constant 0 : i32
    %c0_i32_0 = arith.constant 0 : i32
    %c0_i32_1 = arith.constant 0 : i32
    return %c0_i32, %c0_i32_0 : i32, i32
  }
  func.func @transform_5(%arg0: i32, %arg1: i32, %arg2: memref<1xi32, #tpu.memory_space<smem>>) -> (i32, i32) {
    %c0_i32 = arith.constant 0 : i32
    %c0_i32_0 = arith.constant 0 : i32
    return %arg0, %c0_i32 : i32, i32
  }
}

module attributes {stable_mosaic.version = 11 : i64} {
  func.func @_mlp_kernel(%arg0: i32, %arg1: i32, %arg2: memref<1xi32, #tpu.memory_space<smem>>, %arg3: memref<8x64xf32, #tpu.memory_space<vmem>>, %arg4: memref<64x256xf32, #tpu.memory_space<vmem>>, %arg5: memref<1x256xf32, #tpu.memory_space<vmem>>, %arg6: memref<256x64xf32, #tpu.memory_space<vmem>>, %arg7: memref<1x64xf32, #tpu.memory_space<vmem>>, %arg8: memref<8x64xf32, #tpu.memory_space<vmem>>, %arg9: memref<8x64xf32, #tpu.memory_space<vmem>>) attributes {dimension_semantics = [#tpu.dimension_semantics<parallel>, #tpu.dimension_semantics<arbitrary>], iteration_bounds = array<i64: 2, 1>, scalar_prefetch = 1 : i64, scratch_operands = 1 : i64, tpu.core_type = #tpu.core_type<tc>, window_params = [{transform_indices = @transform_0, window_bounds = array<i64: 8, 64>}, {transform_indices = @transform_1, window_bounds = array<i64: 64, 256>}, {transform_indices = @transform_2, window_bounds = array<i64: 1, 256>}, {transform_indices = @transform_3, window_bounds = array<i64: 256, 64>}, {pipeline_mode = #tpu.pipeline_mode<synchronous>, transform_indices = @transform_4, window_bounds = array<i64: 1, 64>}, {transform_indices = @transform_5, window_bounds = array<i64: 8, 64>}]} {
    %c0_i32 = arith.constant 0 : i32
    %0 = arith.cmpi eq, %arg1, %c0_i32 : i32
    %1 = arith.extui %0 : i1 to i32
    %c0_i32_0 = arith.constant 0 : i32
    %2 = arith.cmpi ne, %1, %c0_i32_0 : i32
    scf.if %2 {
      %cst_18 = arith.constant 0.000000e+00 : f32
      %25 = vector.broadcast %cst_18 : f32 to vector<8x64xf32>
      %c0_19 = arith.constant 0 : index
      %c0_20 = arith.constant 0 : index
      %26 = vector.load %arg9[%c0_19, %c0_20] : memref<8x64xf32, #tpu.memory_space<vmem>>, vector<8x64xf32>
      tpu.vector_store %arg9[%c0_19, %c0_20], %25 {strides = array<i32>} : memref<8x64xf32, #tpu.memory_space<vmem>>, vector<8x64xf32>,
    } else {
    }
    %c0 = arith.constant 0 : index
    %c0_1 = arith.constant 0 : index
    %3 = vector.load %arg3[%c0, %c0_1] : memref<8x64xf32, #tpu.memory_space<vmem>>, vector<8x64xf32>
    %c0_2 = arith.constant 0 : index
    %c0_3 = arith.constant 0 : index
    %4 = vector.load %arg4[%c0_2, %c0_3] : memref<64x256xf32, #tpu.memory_space<vmem>>, vector<64x256xf32>
    %cst = arith.constant dense<0.000000e+00> : vector<8x256xf32>
    %5 = tpu.matmul %3, %4, %cst {dimension_numbers = #tpu.dot_dimension_numbers<[1], [0], [0], [1], [0, 0, 1, 1], [], []>} : vector<8x64xf32>, vector<64x256xf32>, vector<8x256xf32> -> vector<8x256xf32>
    %c0_4 = arith.constant 0 : index
    %c0_5 = arith.constant 0 : index
    %6 = vector.load %arg5[%c0_4, %c0_5] : memref<1x256xf32, #tpu.memory_space<vmem>>, vector<1x256xf32>
    %7 = vector.broadcast %6 : vector<1x256xf32> to vector<8x256xf32>
    %8 = arith.addf %5, %7 : vector<8x256xf32>
    %cst_6 = arith.constant 5.000000e-01 : f32
    %9 = vector.broadcast %cst_6 : f32 to vector<8x256xf32>
    %10 = arith.mulf %9, %8 : vector<8x256xf32>
    %cst_7 = arith.constant 0.707106769 : f32
    %11 = vector.broadcast %cst_7 : f32 to vector<8x256xf32>
    %12 = arith.mulf %8, %11 : vector<8x256xf32>
    %13 = math.erf %12 : vector<8x256xf32>
    %cst_8 = arith.constant 1.000000e+00 : f32
    %14 = vector.broadcast %cst_8 : f32 to vector<8x256xf32>
    %15 = arith.addf %14, %13 : vector<8x256xf32>
    %16 = arith.mulf %10, %15 : vector<8x256xf32>
    %c0_9 = arith.constant 0 : index
    %c0_10 = arith.constant 0 : index
    %17 = vector.load %arg9[%c0_9, %c0_10] : memref<8x64xf32, #tpu.memory_space<vmem>>, vector<8x64xf32>
    %c0_11 = arith.constant 0 : index
    %c0_12 = arith.constant 0 : index
    %18 = vector.load %arg6[%c0_11, %c0_12] : memref<256x64xf32, #tpu.memory_space<vmem>>, vector<256x64xf32>
    %cst_13 = arith.constant dense<0.000000e+00> : vector<8x64xf32>
    %19 = tpu.matmul %16, %18, %cst_13 {dimension_numbers = #tpu.dot_dimension_numbers<[1], [0], [0], [1], [0, 0, 1, 1], [], []>} : vector<8x256xf32>, vector<256x64xf32>, vector<8x64xf32> -> vector<8x64xf32>
    %20 = arith.addf %17, %19 : vector<8x64xf32>
    %c0_14 = arith.constant 0 : index
    %c0_15 = arith.constant 0 : index
    %21 = vector.load %arg9[%c0_14, %c0_15] : memref<8x64xf32, #tpu.memory_space<vmem>>, vector<8x64xf32>
    tpu.vector_store %arg9[%c0_14, %c0_15], %20 {strides = array<i32>} : memref<8x64xf32, #tpu.memory_space<vmem>>, vector<8x64xf32>,
    %c0_i32_16 = arith.constant 0 : i32
    %22 = arith.cmpi eq, %arg1, %c0_i32_16 : i32
    %23 = arith.extui %22 : i1 to i32
    %c0_i32_17 = arith.constant 0 : i32
    %24 = arith.cmpi ne, %23, %c0_i32_17 : i32
    scf.if %24 {
      %c0_18 = arith.constant 0 : index
      %c0_19 = arith.constant 0 : index
      %25 = vector.load %arg9[%c0_18, %c0_19] : memref<8x64xf32, #tpu.memory_space<vmem>>, vector<8x64xf32>
      %c0_20 = arith.constant 0 : index
      %c0_21 = arith.constant 0 : index
      %26 = vector.load %arg7[%c0_20, %c0_21] : memref<1x64xf32, #tpu.memory_space<vmem>>, vector<1x64xf32>
      %27 = vector.broadcast %26 : vector<1x64xf32> to vector<8x64xf32>
      %28 = arith.addf %25, %27 : vector<8x64xf32>
      %c0_22 = arith.constant 0 : index
      %c0_23 = arith.constant 0 : index
      %29 = vector.load %arg8[%c0_22, %c0_23] : memref<8x64xf32, #tpu.memory_space<vmem>>, vector<8x64xf32>
      tpu.vector_store %arg8[%c0_22, %c0_23], %28 {strides = array<i32>} : memref<8x64xf32, #tpu.memory_space<vmem>>, vector<8x64xf32>,
    } else {
    }
    return
  }
  func.func @transform_0(%arg0: i32, %arg1: i32, %arg2: memref<1xi32, #tpu.memory_space<smem>>) -> (i32, i32) {
    %c0_i32 = arith.constant 0 : i32
    %c0_i32_0 = arith.constant 0 : i32
    return %arg0, %c0_i32 : i32, i32
  }
  func.func @transform_1(%arg0: i32, %arg1: i32, %arg2: memref<1xi32, #tpu.memory_space<smem>>) -> (i32, i32) {
    %c0_i32 = arith.constant 0 : i32
    %c0_i32_0 = arith.constant 0 : i32
    return %c0_i32, %arg1 : i32, i32
  }
  func.func @transform_2(%arg0: i32, %arg1: i32, %arg2: memref<1xi32, #tpu.memory_space<smem>>) -> (i32, i32) {
    %c0_i32 = arith.constant 0 : i32
    %c0_i32_0 = arith.constant 0 : i32
    return %c0_i32, %arg1 : i32, i32
  }
  func.func @transform_3(%arg0: i32, %arg1: i32, %arg2: memref<1xi32, #tpu.memory_space<smem>>) -> (i32, i32) {
    %c0_i32 = arith.constant 0 : i32
    %c0_i32_0 = arith.constant 0 : i32
    return %arg1, %c0_i32 : i32, i32
  }
  func.func @transform_4(%arg0: i32, %arg1: i32, %arg2: memref<1xi32, #tpu.memory_space<smem>>) -> (i32, i32) {
    %c0_i32 = arith.constant 0 : i32
    %c0_i32_0 = arith.constant 0 : i32
    %c0_i32_1 = arith.constant 0 : i32
    return %c0_i32, %c0_i32_0 : i32, i32
  }
  func.func @transform_5(%arg0: i32, %arg1: i32, %arg2: memref<1xi32, #tpu.memory_space<smem>>) -> (i32, i32) {
    %c0_i32 = arith.constant 0 : i32
    %c0_i32_0 = arith.constant 0 : i32
    return %arg0, %c0_i32 : i32, i32
  }
}

</mosaic_0001>

<llo_original>
// kernel: tpu_custom_call.1
$region0: #{tpu_custom_call.1}
  #allocation0 [shape = 'u32[]', space=smem, size = 0x4, offset = 0x4, fixed_abs, tag = 'smem constant byte address 0x4 - core index']
  #allocation1 [shape = 'u32[144,128]{1,0:T(1,128)}', space=vmem, size = 0x12000, scoped, tag = 'internal scratch']
  #allocation2 [shape = 'f32[8,64]{1,0:T(8,128)}', space=vmem, size = 0x1000, scoped, tag = 'scratch operand']
  #allocation3 [shape = 's32[1]{0}', space=sflag, size = 0x4, scoped, tag = 'scoped memory for tpu_custom_call.1']
  #allocation4 [shape = 's32[1]{0:T(128)S(6)}', space=smem, size = 0x200, scoped, tag = 'prefetched SMEM operand 0']
  %s0 = inlined_call_operand.<no memory space> [shape: s32[1], index: 0, kind: input, shape index: {}]
  %s1 = inlined_call_operand.hbm [shape: f32[16,64], index: 1, kind: input, shape index: {}]
  %s2 = inlined_call_operand.hbm [shape: f32[64,256], index: 2, kind: input, shape index: {}]
  %s3 = inlined_call_operand.hbm [shape: f32[1,256], index: 3, kind: input, shape index: {}]
  %s4 = inlined_call_operand.hbm [shape: f32[256,64], index: 4, kind: input, shape index: {}]
  %s5 = inlined_call_operand.hbm [shape: f32[1,64], index: 5, kind: input, shape index: {}]
  %s6 = inlined_call_operand.hbm [shape: f32[16,64], index: 6, kind: output, shape index: {}]
  %s7 = sld [smem:[#allocation0]]
  $region81: #{tpu_custom_call.1} parent=0
    _
  %s9 = ssub.s32 1, %s7
  %s10 = scalar_select 0, %s9, %s7
  %11 = sst [smem:[#allocation4]] %s0
  $region1: #{tpu_custom_call.1} parent=0
    #allocation5 [shape = 'u8[8192]{0}', space=vmem, size = 0x2000, scoped, tag = 'input window, operand 1']
    #allocation6 [shape = 's32[2]{0}', space=sflag, size = 0x8, scoped, tag = 'scoped memory for tpu_custom_call.1']
    #allocation7 [shape = 's32[2]{0}', space=sflag, size = 0x8, scoped, tag = 'scoped memory for tpu_custom_call.1']
    #allocation8 [shape = 'u8[65536]{0}', space=vmem, size = 0x10000, scoped, tag = 'input window, operand 2, single buffered']
    #allocation9 [shape = 's32[1]{0}', space=sflag, size = 0x4, scoped, tag = 'scoped memory for tpu_custom_call.1']
    #allocation10 [shape = 'u8[1024]{0}', space=vmem, size = 0x400, scoped, tag = 'input window, operand 3, single buffered']
    #allocation11 [shape = 'u8[131072]{0}', space=vmem, size = 0x20000, scoped, tag = 'input window, operand 4, single buffered']
    #allocation12 [shape = 's32[1]{0}', space=sflag, size = 0x4, scoped, tag = 'scoped memory for tpu_custom_call.1']
    #allocation13 [shape = 'u8[512]{0}', space=vmem, size = 0x400, scoped, tag = 'input window, operand 5, single buffered']
    #allocation14 [shape = 'u8[8192]{0}', space=vmem, size = 0x2000, scoped, tag = 'output window, operand 0']
    %12 = vsyncpa [#allocation6], 0
    %s13 = scalar_lea.sflag [#allocation6], 1
    %14 = vsyncpa %s13, 0
    %15 = vsyncpa [#allocation9], 0
    %16 = vsyncpa [#allocation12], 0
    %17 = vsyncpa [#allocation7], 0
    %s18 = scalar_lea.sflag [#allocation7], 1
    %19 = vsyncpa %s18, 0
    loop: start=0, step=1, limit=4
    $region2: #{tpu_custom_call.1} parent=1 // loop_pre_header
      _
    $region3: #{tpu_custom_call.1} parent=1 // loop_header
      %s21 = sphi 0, %s25
      %p22 = scmp.ge.s32.totalorder %s21, 4
      %s28 = sphi 0, %s40
      %s29 = sphi 0, %s36
      %s30 = sphi 0, %s28
      %s31 = sphi 0, %s29
      %s32 = sphi 0, %s30
      %s33 = sphi 0, %s31
      %s43 = sphi 0, %s45
      %s46 = sphi 0, %s43
      %s47 = sphi 0, %s46
      %s63 = sphi 0, %s47
      %s69 = sphi 0, %s71
      %s72 = sphi 0, %s69
      %s73 = sphi 0, %s72
      %s89 = sphi 0, %s73
      %s95 = sphi 0, %s97
      %s98 = sphi 0, %s95
      %s99 = sphi 0, %s98
      %s115 = sphi 0, %s99
      %s121 = sphi 0, %s123
      %s124 = sphi 0, %s121
      %s125 = sphi 0, %s124
      %s141 = sphi 0, %s125
      %s145 = sphi 0, %s145
      %s147 = sphi 0, %s145
      %s148 = sphi 0, %s147
      %s162 = sphi 0, %s148
      %s168 = sphi 0, %s170
      %s171 = sphi 0, %s168
      %s172 = sphi 0, %s171
      %s188 = sphi 0, %s172
    $region4: #{tpu_custom_call.1} parent=1 // loop_header_branch
      %24 = sbr.rel (%p22) target = $region8
    $region5: #{tpu_custom_call.1} parent=1 // loop_body
      %s26 = ssub.s32 %s21, 1
      %s27 = ssub.s32 %s21, 2
      %s34 = sadd.s32 1, %s29
      %p35 = scmp.ge.s32.totalorder %s34, 1
      %s36 = scalar_select %p35, 0, %s34
      %s37 = sadd.s32 1, %s28
      %s38 = scalar_select %p35, %s37, %s28
      %p39 = scmp.ge.s32.totalorder %s38, 2
      %s40 = scalar_select %p39, 0, %s38
      %s41 = ssub.s32 %s28, %s40
      %p42 = scmp.eq.s32.totalorder %s41, 0
      %s44 = sadd.s32 %s43, 1
      %s45 = scalar_select %p42, %s43, %s44
      %p48 = pneg %p42
      %p49 = scmp.eq.s32.totalorder %s21, 1
      %p50 = por %p48, %p49
      %p51 = scmp.ne.s32.totalorder %s43, %s46
      %p52 = scmp.eq.s32.totalorder %s21, 0
      %p53 = por %p51, %p52
      %p54 = scmp.ne.s32.totalorder %s43, %s46
      %p55 = scmp.eq.s32.totalorder %s26, 1
      %p56 = por %p54, %p55
      %p57 = scmp.ne.s32.totalorder %s46, %s47
      %p58 = scmp.eq.s32.totalorder %s26, 0
      %p59 = por %p57, %p58
      %p60 = scmp.ne.s32.totalorder %s46, %s47
      %p61 = scmp.eq.s32.totalorder %s27, 1
      %p62 = por %p60, %p61
      %p64 = scmp.ne.s32.totalorder %s47, %s63
      %p65 = scmp.eq.s32.totalorder %s27, 0
      %p66 = por %p64, %p65
      %s67 = ssub.s32 %s29, %s36
      %p68 = scmp.eq.s32.totalorder %s67, 0
      %s70 = sadd.s32 %s69, 1
      %s71 = scalar_select %p68, %s69, %s70
      %p74 = pneg %p68
      %p75 = scmp.eq.s32.totalorder %s21, 1
      %p76 = por %p74, %p75
      %p77 = scmp.ne.s32.totalorder %s69, %s72
      %p78 = scmp.eq.s32.totalorder %s21, 0
      %p79 = por %p77, %p78
      %p80 = scmp.ne.s32.totalorder %s69, %s72
      %p81 = scmp.eq.s32.totalorder %s26, 1
      %p82 = por %p80, %p81
      %p83 = scmp.ne.s32.totalorder %s72, %s73
      %p84 = scmp.eq.s32.totalorder %s26, 0
      %p85 = por %p83, %p84
      %p86 = scmp.ne.s32.totalorder %s72, %s73
      %p87 = scmp.eq.s32.totalorder %s27, 1
      %p88 = por %p86, %p87
      %p90 = scmp.ne.s32.totalorder %s73, %s89
      %p91 = scmp.eq.s32.totalorder %s27, 0
      %p92 = por %p90, %p91
      %s93 = ssub.s32 %s29, %s36
      %p94 = scmp.eq.s32.totalorder %s93, 0
      %s96 = sadd.s32 %s95, 1
      %s97 = scalar_select %p94, %s95, %s96
      %p100 = pneg %p94
      %p101 = scmp.eq.s32.totalorder %s21, 1
      %p102 = por %p100, %p101
      %p103 = scmp.ne.s32.totalorder %s95, %s98
      %p104 = scmp.eq.s32.totalorder %s21, 0
      %p105 = por %p103, %p104
      %p106 = scmp.ne.s32.totalorder %s95, %s98
      %p107 = scmp.eq.s32.totalorder %s26, 1
      %p108 = por %p106, %p107
      %p109 = scmp.ne.s32.totalorder %s98, %s99
      %p110 = scmp.eq.s32.totalorder %s26, 0
      %p111 = por %p109, %p110
      %p112 = scmp.ne.s32.totalorder %s98, %s99
      %p113 = scmp.eq.s32.totalorder %s27, 1
      %p114 = por %p112, %p113
      %p116 = scmp.ne.s32.totalorder %s99, %s115
      %p117 = scmp.eq.s32.totalorder %s27, 0
      %p118 = por %p116, %p117
      %s119 = ssub.s32 %s29, %s36
      %p120 = scmp.eq.s32.totalorder %s119, 0
      %s122 = sadd.s32 %s121, 1
      %s123 = scalar_select %p120, %s121, %s122
      %p126 = pneg %p120
      %p127 = scmp.eq.s32.totalorder %s21, 1
      %p128 = por %p126, %p127
      %p129 = scmp.ne.s32.totalorder %s121, %s124
      %p130 = scmp.eq.s32.totalorder %s21, 0
      %p131 = por %p129, %p130
      %p132 = scmp.ne.s32.totalorder %s121, %s124
      %p133 = scmp.eq.s32.totalorder %s26, 1
      %p134 = por %p132, %p133
      %p135 = scmp.ne.s32.totalorder %s124, %s125
      %p136 = scmp.eq.s32.totalorder %s26, 0
      %p137 = por %p135, %p136
      %p138 = scmp.ne.s32.totalorder %s124, %s125
      %p139 = scmp.eq.s32.totalorder %s27, 1
      %p140 = por %p138, %p139
      %p142 = scmp.ne.s32.totalorder %s125, %s141
      %p143 = scmp.eq.s32.totalorder %s27, 0
      %p144 = por %p142, %p143
      %s146 = sadd.s32 %s145, 1
      %p149 = scmp.eq.s32.totalorder %s21, 1
      %p150 = scmp.ne.s32.totalorder %s145, %s147
      %p151 = scmp.eq.s32.totalorder %s21, 0
      %p152 = por %p150, %p151
      %p153 = scmp.ne.s32.totalorder %s145, %s147
      %p154 = scmp.eq.s32.totalorder %s26, 1
      %p155 = por %p153, %p154
      %p156 = scmp.ne.s32.totalorder %s147, %s148
      %p157 = scmp.eq.s32.totalorder %s26, 0
      %p158 = por %p156, %p157
      %p159 = scmp.ne.s32.totalorder %s147, %s148
      %p160 = scmp.eq.s32.totalorder %s27, 1
      %p161 = por %p159, %p160
      %p163 = scmp.ne.s32.totalorder %s148, %s162
      %p164 = scmp.eq.s32.totalorder %s27, 0
      %p165 = por %p163, %p164
      %s166 = ssub.s32 %s28, %s40
      %p167 = scmp.eq.s32.totalorder %s166, 0
      %s169 = sadd.s32 %s168, 1
      %s170 = scalar_select %p167, %s168, %s169
      %p173 = pneg %p167
      %p174 = scmp.eq.s32.totalorder %s21, 1
      %p175 = por %p173, %p174
      %p176 = scmp.ne.s32.totalorder %s168, %s171
      %p177 = scmp.eq.s32.totalorder %s21, 0
      %p178 = por %p176, %p177
      %p179 = scmp.ne.s32.totalorder %s168, %s171
      %p180 = scmp.eq.s32.totalorder %s26, 1
      %p181 = por %p179, %p180
      %p182 = scmp.ne.s32.totalorder %s171, %s172
      %p183 = scmp.eq.s32.totalorder %s26, 0
      %p184 = por %p182, %p183
      %p185 = scmp.ne.s32.totalorder %s171, %s172
      %p186 = scmp.eq.s32.totalorder %s27, 1
      %p187 = por %p185, %p186
      %p189 = scmp.ne.s32.totalorder %s172, %s188
      %p190 = scmp.eq.s32.totalorder %s27, 0
      %p191 = por %p189, %p190
      %p192 = scmp.le.s32.totalorder 1, %s21
      %p193 = scmp.lt.s32.totalorder %s21, 3
      %p194 = pnand %p192, %p193
      %p195 = pneg %p194
      // Predicated region
      $region9: #{tpu_custom_call.1} parent=5 // pred_check
        _
      $region10: #{tpu_custom_call.1} parent=5 // pred_check_branch
        %197 = sbr.rel (%p194) target = $region12
      $region11: #{tpu_custom_call.1} parent=5 // pred_region
        %s198 = ssub.s32 %s21, 1
        // Predicated region
        $region13: #{tpu_custom_call.1} parent=11 // pred_check
          %p199 = pneg %p85
        $region14: #{tpu_custom_call.1} parent=11 // pred_check_branch
          %201 = sbr.rel (%p199) target = $region16
        $region15: #{tpu_custom_call.1} parent=11 // pred_region
          %s202 = smul.u32 2, %s31
          %s204 = ssub.s32 2048, 2048
          %205 = vsyncadd [#allocation9], %s204
          %s206 = smul.addr %s202, 128
          %s207 = scalar_lea.hbm %s2, %s206
          %s208 = sshll.u32 [#allocation8], 4
          %s209 = int_to_ptr.vmem [resolvable:$true] %s208
          %214 = dma.hbm_to_vmem [thread:$0]  %s207, 2048, %s209, [#allocation9], 256, 256, 16
        $region16: #{tpu_custom_call.1} parent=11 // pred_fallthru
          _
        // Predicated region
        $region17: #{tpu_custom_call.1} parent=11 // pred_check
          %p215 = pneg %p111
        $region18: #{tpu_custom_call.1} parent=11 // pred_check_branch
          %217 = sbr.rel (%p215) target = $region20
        $region19: #{tpu_custom_call.1} parent=11 // pred_region
          %s218 = smul.u32 2, %s31
          %s220 = ssub.s32 32, 32
          %221 = vsyncadd [#allocation9], %s220
          %s222 = smul.addr %s218, 16
          %s223 = scalar_lea.hbm %s3, %s222
          %s225 = sshll.u32 [#allocation10], 4
          %s226 = int_to_ptr.vmem [resolvable:$true] %s225
          %228 = dma.hbm_to_vmem [thread:$0]  %s223, 32, %s226, [#allocation9]
        $region20: #{tpu_custom_call.1} parent=11 // pred_fallthru
          _
        // Predicated region
        $region21: #{tpu_custom_call.1} parent=11 // pred_check
          %p229 = pneg %p137
        $region22: #{tpu_custom_call.1} parent=11 // pred_check_branch
          %231 = sbr.rel (%p229) target = $region24
        $region23: #{tpu_custom_call.1} parent=11 // pred_region
          %s232 = smul.u32 32, %s31
          %s234 = ssub.s32 4096, 4096
          %235 = vsyncadd [#allocation12], %s234
          %s236 = smul.addr %s232, 128
          %s237 = scalar_lea.hbm %s4, %s236
          %s238 = sshll.u32 [#allocation11], 4
          %s239 = int_to_ptr.vmem [resolvable:$true] %s238
          %244 = dma.hbm_to_vmem [thread:$0]  %s237, 4096, %s239, [#allocation12], 128, 128, 8
        $region24: #{tpu_custom_call.1} parent=11 // pred_fallthru
          _
        // Predicated region
        $region25: #{tpu_custom_call.1} parent=11 // pred_check
          %p245 = pneg %p158
        $region26: #{tpu_custom_call.1} parent=11 // pred_check_branch
          %247 = sbr.rel (%p245) target = $region28
        $region27: #{tpu_custom_call.1} parent=11 // pred_region
          %s249 = ssub.s32 16, 16
          %250 = vsyncadd [#allocation12], %s249
          %s252 = sshll.u32 [#allocation13], 4
          %s253 = int_to_ptr.vmem [resolvable:$true] %s252
          %255 = dma.hbm_to_vmem [thread:$0]  %s5, 16, %s253, [#allocation12]
        $region28: #{tpu_custom_call.1} parent=11 // pred_fallthru
          _
      $region12: #{tpu_custom_call.1} parent=5 // pred_fallthru
        _
      %p256 = scmp.lt.s32.totalorder %s21, 2
      // Predicated region
      $region29: #{tpu_custom_call.1} parent=5 // pred_check
        %p257 = pneg %p256
      $region30: #{tpu_custom_call.1} parent=5 // pred_check_branch
        %259 = sbr.rel (%p257) target = $region32
      $region31: #{tpu_custom_call.1} parent=5 // pred_region
        // Predicated region
        $region33: #{tpu_custom_call.1} parent=31 // pred_check
          %p260 = pneg %p53
        $region34: #{tpu_custom_call.1} parent=31 // pred_check_branch
          %262 = sbr.rel (%p260) target = $region36
        $region35: #{tpu_custom_call.1} parent=31 // pred_region
          %s263 = sand.u32 %s43, 1
          %s264 = scalar_lea.sflag [#allocation6], %s263
          %s265 = sand.u32 %s43, 1
          %s266 = smul.addr %s265, 8
          %s267 = scalar_lea.vmem [#allocation5], %s266
          %s269 = ssub.s32 128, 128
          %270 = vsyncadd %s264, %s269
          %s271 = smul.addr %s28, 128
          %s272 = scalar_lea.hbm %s1, %s271
          %s274 = sshll.u32 %s267, 4
          %s275 = int_to_ptr.vmem [resolvable:$true] %s274
          %277 = dma.hbm_to_vmem [thread:$0]  %s272, 128, %s275, %s264
        $region36: #{tpu_custom_call.1} parent=31 // pred_fallthru
          _
      $region32: #{tpu_custom_call.1} parent=5 // pred_fallthru
        _
      %p278 = scmp.le.s32.totalorder 1, %s21
      %p279 = scmp.lt.s32.totalorder %s21, 3
      %p280 = pnand %p278, %p279
      %p281 = pneg %p280
      // Predicated region
      $region37: #{tpu_custom_call.1} parent=5 // pred_check
        _
      $region38: #{tpu_custom_call.1} parent=5 // pred_check_branch
        %283 = sbr.rel (%p280) target = $region40
      $region39: #{tpu_custom_call.1} parent=5 // pred_region
        %s284 = ssub.s32 %s21, 1
        %s285 = sand.u32 %s46, 1
        %s286 = scalar_lea.sflag [#allocation6], %s285
        %s287 = sand.u32 %s46, 1
        %s288 = smul.addr %s287, 8
        %s289 = scalar_lea.vmem [#allocation5], %s288
        // Predicated region
        $region41: #{tpu_custom_call.1} parent=39 // pred_check
          %p290 = pneg %p59
        $region42: #{tpu_custom_call.1} parent=39 // pred_check_branch
          %292 = sbr.rel (%p290) target = $region44
        $region43: #{tpu_custom_call.1} parent=39 // pred_region
          %293 = dma.done %s286, 128
        $region44: #{tpu_custom_call.1} parent=39 // pred_fallthru
          _
        // Predicated region
        $region45: #{tpu_custom_call.1} parent=39 // pred_check
          %p294 = pneg %p85
        $region46: #{tpu_custom_call.1} parent=39 // pred_check_branch
          %296 = sbr.rel (%p294) target = $region48
        $region47: #{tpu_custom_call.1} parent=39 // pred_region
          %297 = dma.done [#allocation9], 2048
        $region48: #{tpu_custom_call.1} parent=39 // pred_fallthru
          _
        // Predicated region
        $region49: #{tpu_custom_call.1} parent=39 // pred_check
          %p298 = pneg %p111
        $region50: #{tpu_custom_call.1} parent=39 // pred_check_branch
          %300 = sbr.rel (%p298) target = $region52
        $region51: #{tpu_custom_call.1} parent=39 // pred_region
          %301 = dma.done [#allocation9], 32
        $region52: #{tpu_custom_call.1} parent=39 // pred_fallthru
          _
        // Predicated region
        $region53: #{tpu_custom_call.1} parent=39 // pred_check
          %p302 = pneg %p137
        $region54: #{tpu_custom_call.1} parent=39 // pred_check_branch
          %304 = sbr.rel (%p302) target = $region56
        $region55: #{tpu_custom_call.1} parent=39 // pred_region
          %305 = dma.done [#allocation12], 4096
        $region56: #{tpu_custom_call.1} parent=39 // pred_fallthru
          _
        // Predicated region
        $region57: #{tpu_custom_call.1} parent=39 // pred_check
          %p306 = pneg %p158
        $region58: #{tpu_custom_call.1} parent=39 // pred_check_branch
          %308 = sbr.rel (%p306) target = $region60
        $region59: #{tpu_custom_call.1} parent=39 // pred_region
          %309 = dma.done [#allocation12], 16
        $region60: #{tpu_custom_call.1} parent=39 // pred_fallthru
          _
        %s310 = sand.u32 %s46, 1
        %s311 = scalar_lea.sflag [#allocation6], %s310
        %s312 = sand.u32 %s46, 1
        %s313 = smul.addr %s312, 8
        %s314 = scalar_lea.vmem [#allocation5], %s313
        %p315 = pneg %p59
        %p316 = pneg %p56
        %p317 = pneg %p85
        %p318 = pneg %p82
        %p319 = pneg %p111
        %p320 = pneg %p108
        %p321 = pneg %p137
        %p322 = pneg %p134
        %p323 = pneg %p158
        %p324 = pneg %p155
        %p325 = pneg %p184
        %p326 = pneg %p181
        %s327 = sand.u32 %s171, 1
        %s328 = scalar_lea.sflag [#allocation7], %s327
        %s329 = sand.u32 %s171, 1
        %s330 = smul.addr %s329, 8
        %s331 = scalar_lea.vmem [#allocation14], %s330
        %s332 = smul.u32 2, %s31
        %s333 = smul.u32 2, %s31
        %s334 = smul.u32 32, %s31
        %p335 = scmp.eq.s32.totalorder %s31, 0
        // Predicated region
        $region61: #{tpu_custom_call.1} parent=39 // pred_check
          %p336 = pneg %p335
        $region62: #{tpu_custom_call.1} parent=39 // pred_check_branch
          %338 = sbr.rel (%p336) target = $region64
        $region63: #{tpu_custom_call.1} parent=39 // pred_region
          %vm339 = vcmask 523264
          %340 = vst.msk [vmem:[#allocation2] sm:$0xff] %vm339, 0.0
        $region64: #{tpu_custom_call.1} parent=39 // pred_fallthru
          _
        %v341 = vld [vmem:[%s289] sm:$0xff]
        %v342 = vld [vmem:[#allocation8] sm:$0xff]
        %v343 = vld [vmem:[#allocation8 + $0x8] sm:$0xff]
        %v344 = vld [vmem:[#allocation8 + $0x10] sm:$0xff]
        %v345 = vld [vmem:[#allocation8 + $0x18] sm:$0xff]
        %v346 = vld [vmem:[#allocation8 + $0x20] sm:$0xff]
        %v347 = vld [vmem:[#allocation8 + $0x28] sm:$0xff]
        %v348 = vld [vmem:[#allocation8 + $0x30] sm:$0xff]
        %v349 = vld [vmem:[#allocation8 + $0x38] sm:$0xff]
        %v350 = vld [vmem:[#allocation8 + $0x40] sm:$0xff]
        %v351 = vld [vmem:[#allocation8 + $0x48] sm:$0xff]
        %v352 = vld [vmem:[#allocation8 + $0x50] sm:$0xff]
        %v353 = vld [vmem:[#allocation8 + $0x58] sm:$0xff]
        %v354 = vld [vmem:[#allocation8 + $0x60] sm:$0xff]
        %v355 = vld [vmem:[#allocation8 + $0x68] sm:$0xff]
        %v356 = vld [vmem:[#allocation8 + $0x70] sm:$0xff]
        %v357 = vld [vmem:[#allocation8 + $0x78] sm:$0xff]
        %v358 = vld [vmem:[#allocation10] sm:$0x3]
        %v360 = vlaneseq
        %v361 = vshrl.u32 %v360, 7
        %v362 = vsub.s32 0, %v361
        %v363 = vrot.slane %v358, %v362
        %v364 = vlaneseq
        %v365 = vshrl.u32 %v364, 7
        %v366 = vsub.s32 1, %v365
        %v367 = vrot.slane %v358, %v366
        %vm370 = vcmask 523264
        %v372 = vsel %vm370, %v341, 0
        %374 = vmatprep.subr.mxu0 %v343
        %375 = vmatpush1.msra.mxu0 %v342
        %376 = vmatprep.subr.mxu0 %v345
        %377 = vmatpush1.msra.mxu0 %v344
        %378 = vmatprep.subr.mxu0 %v347
        %379 = vmatpush1.msra.mxu0 %v346
        %380 = vmatprep.subr.mxu0 %v349
        %381 = vmatpush1.msra.mxu0 %v348
        %382 = vmatprep.subr.mxu0 %v351
        %383 = vmatpush1.msra.mxu0 %v350
        %384 = vmatprep.subr.mxu0 %v353
        %385 = vmatpush1.msra.mxu0 %v352
        %386 = vmatprep.subr.mxu0 %v355
        %387 = vmatpush1.msra.mxu0 %v354
        %388 = vmatprep.subr.mxu0 %v357
        %389 = vmatpush1.msra.mxu0 %v356
        %390 = vmatprep.subr.mxu0 0.0
        %391 = vmatpush1.msra.mxu0 0.0
        %392 = vmatprep.subr.mxu0 0.0
        %393 = vmatpush1.msra.mxu0 0.0
        %394 = vmatprep.subr.mxu0 0.0
        %395 = vmatpush1.msra.mxu0 0.0
        %396 = vmatprep.subr.mxu0 0.0
        %397 = vmatpush1.msra.mxu0 0.0
        %398 = vmatprep.subr.mxu0 0.0
        %399 = vmatpush1.msra.mxu0 0.0
        %400 = vmatprep.subr.mxu0 0.0
        %401 = vmatpush1.msra.mxu0 0.0
        %402 = vmatprep.subr.mxu0 0.0
        %403 = vmatpush1.msra.mxu0 0.0
        %404 = vmatprep.subr.mxu0 0.0
        %405 = vmatpush1.msra.mxu0 0.0
        %406 = vmatprep.subr.mxu0 0.0
        %407 = vmatpush1.msra.mxu0 0.0
        %408 = vmatprep.subr.mxu0 0.0
        %409 = vmatpush1.msra.mxu0 0.0
        %410 = vmatprep.subr.mxu0 0.0
        %411 = vmatpush1.msra.mxu0 0.0
        %412 = vmatprep.subr.mxu0 0.0
        %413 = vmatpush1.msra.mxu0 0.0
        %414 = vmatprep.subr.mxu0 0.0
        %415 = vmatpush1.msra.mxu0 0.0
        %416 = vmatprep.subr.mxu0 0.0
        %417 = vmatpush1.msra.mxu0 0.0
        %418 = vmatprep.subr.mxu0 0.0
        %419 = vmatpush1.msra.mxu0 0.0
        %420 = vmatprep.subr.mxu0 0.0
        %421 = vmatpush1.msra.mxu0 0.0
        %422 = vmatprep.subr.mxu0 0.0
        %423 = vmatpush1.msra.mxu0 0.0
        %424 = vmatprep.subr.mxu0 0.0
        %425 = vmatpush1.msra.mxu0 0.0
        %426 = vmatprep.subr.mxu0 0.0
        %427 = vmatpush1.msra.mxu0 0.0
        %428 = vmatprep.subr.mxu0 0.0
        %429 = vmatpush1.msra.mxu0 0.0
        %430 = vmatprep.subr.mxu0 0.0
        %431 = vmatpush1.msra.mxu0 0.0
        %432 = vmatprep.subr.mxu0 0.0
        %433 = vmatpush1.msra.mxu0 0.0
        %434 = vmatprep.subr.mxu0 0.0
        %435 = vmatpush1.msra.mxu0 0.0
        %436 = vmatprep.subr.mxu0 0.0
        %437 = vmatpush1.msra.mxu0 0.0
        %438 = vmatprep.mubr.f32.mxu0 0.0
        %439 = vmatmul.mubr.f32.gmra.mrb[0].mxu0 %v372
        %v440 = vpop.f32.mrb[0].mxu0
        %v441 = vadd.f32 %v363, %v440
        %v442 = vpop.f32.mrb[0].mxu0
        %v443 = vadd.f32 %v367, %v442
        %444 = vdwg.mxu0
        %v445 = vmul.f32 %v441, 0.5
        %v446 = vmul.f32 %v443, 0.5
        %v447 = vmul.f32 %v441, 0.70710677
        %v448 = vmul.f32 %v443, 0.70710677
        %v449 = verf.f32.pop %v447
        %v450 = verf.f32.pop %v448
        %v451 = vadd.f32 %v449, 1.0
        %v452 = vadd.f32 %v450, 1.0
        %v453 = vmul.f32 %v445, %v451
        %v454 = vmul.f32 %v446, %v452
        %v455 = vld [vmem:[#allocation2] sm:$0xff]
        %v456 = vld [vmem:[#allocation11] sm:$0xff]
        %v457 = vld [vmem:[#allocation11 + $0x8] sm:$0xff]
        %v458 = vld [vmem:[#allocation11 + $0x10] sm:$0xff]
        %v459 = vld [vmem:[#allocation11 + $0x18] sm:$0xff]
        %v460 = vld [vmem:[#allocation11 + $0x20] sm:$0xff]
        %v461 = vld [vmem:[#allocation11 + $0x28] sm:$0xff]
        %v462 = vld [vmem:[#allocation11 + $0x30] sm:$0xff]
        %v463 = vld [vmem:[#allocation11 + $0x38] sm:$0xff]
        %v464 = vld [vmem:[#allocation11 + $0x40] sm:$0xff]
        %v465 = vld [vmem:[#allocation11 + $0x48] sm:$0xff]
        %v466 = vld [vmem:[#allocation11 + $0x50] sm:$0xff]
        %v467 = vld [vmem:[#allocation11 + $0x58] sm:$0xff]
        %v468 = vld [vmem:[#allocation11 + $0x60] sm:$0xff]
        %v469 = vld [vmem:[#allocation11 + $0x68] sm:$0xff]
        %v470 = vld [vmem:[#allocation11 + $0x70] sm:$0xff]
        %v471 = vld [vmem:[#allocation11 + $0x78] sm:$0xff]
        %v472 = vld [vmem:[#allocation11 + $0x80] sm:$0xff]
        %v473 = vld [vmem:[#allocation11 + $0x88] sm:$0xff]
        %v474 = vld [vmem:[#allocation11 + $0x90] sm:$0xff]
        %v475 = vld [vmem:[#allocation11 + $0x98] sm:$0xff]
        %v476 = vld [vmem:[#allocation11 + $0xa0] sm:$0xff]
        %v477 = vld [vmem:[#allocation11 + $0xa8] sm:$0xff]
        %v478 = vld [vmem:[#allocation11 + $0xb0] sm:$0xff]
        %v479 = vld [vmem:[#allocation11 + $0xb8] sm:$0xff]
        %v480 = vld [vmem:[#allocation11 + $0xc0] sm:$0xff]
        %v481 = vld [vmem:[#allocation11 + $0xc8] sm:$0xff]
        %v482 = vld [vmem:[#allocation11 + $0xd0] sm:$0xff]
        %v483 = vld [vmem:[#allocation11 + $0xd8] sm:$0xff]
        %v484 = vld [vmem:[#allocation11 + $0xe0] sm:$0xff]
        %v485 = vld [vmem:[#allocation11 + $0xe8] sm:$0xff]
        %v486 = vld [vmem:[#allocation11 + $0xf0] sm:$0xff]
        %v487 = vld [vmem:[#allocation11 + $0xf8] sm:$0xff]
        %488 = vmatprep.subr.mxu0 0.0
        %489 = vmatpush1.msra.mxu0 %v456
        %490 = vmatprep.subr.mxu0 0.0
        %491 = vmatpush1.msra.mxu0 %v457
        %492 = vmatprep.subr.mxu0 0.0
        %493 = vmatpush1.msra.mxu0 %v458
        %494 = vmatprep.subr.mxu0 0.0
        %495 = vmatpush1.msra.mxu0 %v459
        %496 = vmatprep.subr.mxu0 0.0
        %497 = vmatpush1.msra.mxu0 %v460
        %498 = vmatprep.subr.mxu0 0.0
        %499 = vmatpush1.msra.mxu0 %v461
        %500 = vmatprep.subr.mxu0 0.0
        %501 = vmatpush1.msra.mxu0 %v462
        %502 = vmatprep.subr.mxu0 0.0
        %503 = vmatpush1.msra.mxu0 %v463
        %504 = vmatprep.subr.mxu0 0.0
        %505 = vmatpush1.msra.mxu0 %v464
        %506 = vmatprep.subr.mxu0 0.0
        %507 = vmatpush1.msra.mxu0 %v465
        %508 = vmatprep.subr.mxu0 0.0
        %509 = vmatpush1.msra.mxu0 %v466
        %510 = vmatprep.subr.mxu0 0.0
        %511 = vmatpush1.msra.mxu0 %v467
        %512 = vmatprep.subr.mxu0 0.0
        %513 = vmatpush1.msra.mxu0 %v468
        %514 = vmatprep.subr.mxu0 0.0
        %515 = vmatpush1.msra.mxu0 %v469
        %516 = vmatprep.subr.mxu0 0.0
        %517 = vmatpush1.msra.mxu0 %v470
        %518 = vmatprep.subr.mxu0 0.0
        %519 = vmatpush1.msra.mxu0 %v471
        %520 = vmatprep.subr.mxu0 0.0
        %521 = vmatpush1.msra.mxu0 %v472
        %522 = vmatprep.subr.mxu0 0.0
        %523 = vmatpush1.msra.mxu0 %v473
        %524 = vmatprep.subr.mxu0 0.0
        %525 = vmatpush1.msra.mxu0 %v474
        %526 = vmatprep.subr.mxu0 0.0
        %527 = vmatpush1.msra.mxu0 %v475
        %528 = vmatprep.subr.mxu0 0.0
        %529 = vmatpush1.msra.mxu0 %v476
        %530 = vmatprep.subr.mxu0 0.0
        %531 = vmatpush1.msra.mxu0 %v477
        %532 = vmatprep.subr.mxu0 0.0
        %533 = vmatpush1.msra.mxu0 %v478
        %534 = vmatprep.subr.mxu0 0.0
        %535 = vmatpush1.msra.mxu0 %v479
        %536 = vmatprep.subr.mxu0 0.0
        %537 = vmatpush1.msra.mxu0 %v480
        %538 = vmatprep.subr.mxu0 0.0
        %539 = vmatpush1.msra.mxu0 %v481
        %540 = vmatprep.subr.mxu0 0.0
        %541 = vmatpush1.msra.mxu0 %v482
        %542 = vmatprep.subr.mxu0 0.0
        %543 = vmatpush1.msra.mxu0 %v483
        %544 = vmatprep.subr.mxu0 0.0
        %545 = vmatpush1.msra.mxu0 %v484
        %546 = vmatprep.subr.mxu0 0.0
        %547 = vmatpush1.msra.mxu0 %v485
        %548 = vmatprep.subr.mxu0 0.0
        %549 = vmatpush1.msra.mxu0 %v486
        %550 = vmatprep.subr.mxu0 0.0
        %551 = vmatpush1.msra.mxu0 %v487
        %552 = vmatprep.mubr.f32.mxu0 %v454
        %553 = vmatmul.mubr.f32.gmra.mrb[0].mxu0 %v453
        %v554 = vpop.f32.mrb[0].mxu0
        %v555 = vadd.f32 0.0, %v554
        %v556 = vpop.f32.mrb[0].mxu0
        %557 = vdwg.mxu0
        %v558 = vadd.f32 %v455, %v555
        %559 = vst.msk [vmem:[#allocation2] sm:$0xff] %vm370, %v558
        // Predicated region
        $region65: #{tpu_custom_call.1} parent=39 // pred_check
          %p560 = pneg %p335
        $region66: #{tpu_custom_call.1} parent=39 // pred_check_branch
          %562 = sbr.rel (%p560) target = $region68
        $region67: #{tpu_custom_call.1} parent=39 // pred_region
          %v563 = vld [vmem:[#allocation2] sm:$0xff]
          %v564 = vld [vmem:[#allocation13] sm:$0x1]
          %v566 = vlaneseq
          %v567 = vshrl.u32 %v566, 7
          %v568 = vsub.s32 0, %v567
          %v569 = vrot.slane %v564, %v568
          %v571 = vadd.f32 %v563, %v569
          %572 = vst.msk [vmem:[%s331] sm:$0xff] %vm370, %v571
        $region68: #{tpu_custom_call.1} parent=39 // pred_fallthru
          _
        %s573 = sand.u32 %s171, 1
        %s574 = scalar_lea.sflag [#allocation7], %s573
        %s575 = sand.u32 %s171, 1
        %s576 = smul.addr %s575, 8
        %s577 = scalar_lea.vmem [#allocation14], %s576
        // Predicated region
        $region69: #{tpu_custom_call.1} parent=39 // pred_check
          %p578 = pneg %p181
        $region70: #{tpu_custom_call.1} parent=39 // pred_check_branch
          %580 = sbr.rel (%p578) target = $region72
        $region71: #{tpu_custom_call.1} parent=39 // pred_region
          %s582 = ssub.s32 128, 128
          %583 = vsyncadd %s574, %s582
          %s584 = smul.addr %s30, 128
          %s585 = scalar_lea.hbm %s6, %s584
          %s587 = sshll.u32 %s577, 4
          %s588 = int_to_ptr.vmem [resolvable:$true] %s587
          %590 = dma.vmem_to_hbm [thread:$0]  %s588, 128, %s585, %s574
        $region72: #{tpu_custom_call.1} parent=39 // pred_fallthru
          _
      $region40: #{tpu_custom_call.1} parent=5 // pred_fallthru
        _
      %p591 = scmp.le.s32.totalorder 2, %s21
      // Predicated region
      $region73: #{tpu_custom_call.1} parent=5 // pred_check
        %p592 = pneg %p591
      $region74: #{tpu_custom_call.1} parent=5 // pred_check_branch
        %594 = sbr.rel (%p592) target = $region76
      $region75: #{tpu_custom_call.1} parent=5 // pred_region
        %s595 = ssub.s32 %s21, 2
        // Predicated region
        $region77: #{tpu_custom_call.1} parent=75 // pred_check
          %p596 = pneg %p187
        $region78: #{tpu_custom_call.1} parent=75 // pred_check_branch
          %598 = sbr.rel (%p596) target = $region80
        $region79: #{tpu_custom_call.1} parent=75 // pred_region
          %s599 = sand.u32 %s172, 1
          %s600 = scalar_lea.sflag [#allocation7], %s599
          %s601 = sand.u32 %s172, 1
          %s602 = smul.addr %s601, 8
          %s603 = scalar_lea.vmem [#allocation14], %s602
          %604 = dma.done %s600, 128
        $region80: #{tpu_custom_call.1} parent=75 // pred_fallthru
          _
      $region76: #{tpu_custom_call.1} parent=5 // pred_fallthru
        _
    $region6: #{tpu_custom_call.1} parent=1 // loop_footer
      %s25 = sadd.s32 1, %s21
    $region7: #{tpu_custom_call.1} parent=1 // loop_footer_branch
      %20 = sbr.rel target = $region3
    $region8: #{tpu_custom_call.1} parent=1 // loop_exit
      _
    %605 = vsyncpa [#allocation6], 1
    %s606 = scalar_lea.sflag [#allocation6], 1
    %607 = vsyncpa %s606, 1
    %608 = vsyncpa [#allocation9], 1
    %609 = vsyncpa [#allocation12], 1
    %610 = vsyncpa [#allocation7], 1
    %s611 = scalar_lea.sflag [#allocation7], 1
    %612 = vsyncpa %s611, 1

// kernel: tpu_custom_call.1
$region0: #{tpu_custom_call.1}
  #allocation0 [shape = 'u32[]', space=smem, size = 0x4, offset = 0x4, fixed_abs, tag = 'smem constant byte address 0x4 - core index']
  #allocation1 [shape = 'u32[144,128]{1,0:T(1,128)}', space=vmem, size = 0x12000, scoped, tag = 'internal scratch']
  #allocation2 [shape = 'f32[8,64]{1,0:T(8,128)}', space=vmem, size = 0x1000, scoped, tag = 'scratch operand']
  #allocation3 [shape = 's32[1]{0}', space=sflag, size = 0x4, scoped, tag = 'scoped memory for tpu_custom_call.1']
  #allocation4 [shape = 's32[1]{0:T(128)S(6)}', space=smem, size = 0x200, scoped, tag = 'prefetched SMEM operand 0']
  %s0 = inlined_call_operand.<no memory space> [shape: s32[1], index: 0, kind: input, shape index: {}]
  %s1 = inlined_call_operand.hbm [shape: f32[16,64], index: 1, kind: input, shape index: {}]
  %s2 = inlined_call_operand.hbm [shape: f32[64,256], index: 2, kind: input, shape index: {}]
  %s3 = inlined_call_operand.hbm [shape: f32[1,256], index: 3, kind: input, shape index: {}]
  %s4 = inlined_call_operand.hbm [shape: f32[256,64], index: 4, kind: input, shape index: {}]
  %s5 = inlined_call_operand.hbm [shape: f32[1,64], index: 5, kind: input, shape index: {}]
  %s6 = inlined_call_operand.hbm [shape: f32[16,64], index: 6, kind: output, shape index: {}]
  %s7 = sld [smem:[#allocation0]]
  $region81: #{tpu_custom_call.1} parent=0
    _
  %s9 = ssub.s32 1, %s7
  %s10 = scalar_select 0, %s9, %s7
  %11 = sst [smem:[#allocation4]] %s0
  $region1: #{tpu_custom_call.1} parent=0
    #allocation5 [shape = 'u8[8192]{0}', space=vmem, size = 0x2000, scoped, tag = 'input window, operand 1']
    #allocation6 [shape = 's32[2]{0}', space=sflag, size = 0x8, scoped, tag = 'scoped memory for tpu_custom_call.1']
    #allocation7 [shape = 's32[2]{0}', space=sflag, size = 0x8, scoped, tag = 'scoped memory for tpu_custom_call.1']
    #allocation8 [shape = 'u8[65536]{0}', space=vmem, size = 0x10000, scoped, tag = 'input window, operand 2, single buffered']
    #allocation9 [shape = 's32[1]{0}', space=sflag, size = 0x4, scoped, tag = 'scoped memory for tpu_custom_call.1']
    #allocation10 [shape = 'u8[1024]{0}', space=vmem, size = 0x400, scoped, tag = 'input window, operand 3, single buffered']
    #allocation11 [shape = 'u8[131072]{0}', space=vmem, size = 0x20000, scoped, tag = 'input window, operand 4, single buffered']
    #allocation12 [shape = 's32[1]{0}', space=sflag, size = 0x4, scoped, tag = 'scoped memory for tpu_custom_call.1']
    #allocation13 [shape = 'u8[512]{0}', space=vmem, size = 0x400, scoped, tag = 'input window, operand 5, single buffered']
    #allocation14 [shape = 'u8[8192]{0}', space=vmem, size = 0x2000, scoped, tag = 'output window, operand 0']
    %12 = vsyncpa [#allocation6], 0
    %s13 = scalar_lea.sflag [#allocation6], 1
    %14 = vsyncpa %s13, 0
    %15 = vsyncpa [#allocation9], 0
    %16 = vsyncpa [#allocation12], 0
    %17 = vsyncpa [#allocation7], 0
    %s18 = scalar_lea.sflag [#allocation7], 1
    %19 = vsyncpa %s18, 0
    loop: start=0, step=1, limit=4
    $region2: #{tpu_custom_call.1} parent=1 // loop_pre_header
      _
    $region3: #{tpu_custom_call.1} parent=1 // loop_header
      %s21 = sphi 0, %s25
      %p22 = scmp.ge.s32.totalorder %s21, 4
      %s28 = sphi 0, %s40
      %s29 = sphi 0, %s36
      %s30 = sphi 0, %s28
      %s31 = sphi 0, %s29
      %s32 = sphi 0, %s30
      %s33 = sphi 0, %s31
      %s43 = sphi 0, %s45
      %s46 = sphi 0, %s43
      %s47 = sphi 0, %s46
      %s63 = sphi 0, %s47
      %s69 = sphi 0, %s71
      %s72 = sphi 0, %s69
      %s73 = sphi 0, %s72
      %s89 = sphi 0, %s73
      %s95 = sphi 0, %s97
      %s98 = sphi 0, %s95
      %s99 = sphi 0, %s98
      %s115 = sphi 0, %s99
      %s121 = sphi 0, %s123
      %s124 = sphi 0, %s121
      %s125 = sphi 0, %s124
      %s141 = sphi 0, %s125
      %s145 = sphi 0, %s145
      %s147 = sphi 0, %s145
      %s148 = sphi 0, %s147
      %s162 = sphi 0, %s148
      %s168 = sphi 0, %s170
      %s171 = sphi 0, %s168
      %s172 = sphi 0, %s171
      %s188 = sphi 0, %s172
    $region4: #{tpu_custom_call.1} parent=1 // loop_header_branch
      %24 = sbr.rel (%p22) target = $region8
    $region5: #{tpu_custom_call.1} parent=1 // loop_body
      %s26 = ssub.s32 %s21, 1
      %s27 = ssub.s32 %s21, 2
      %s34 = sadd.s32 1, %s29
      %p35 = scmp.ge.s32.totalorder %s34, 1
      %s36 = scalar_select %p35, 0, %s34
      %s37 = sadd.s32 1, %s28
      %s38 = scalar_select %p35, %s37, %s28
      %p39 = scmp.ge.s32.totalorder %s38, 2
      %s40 = scalar_select %p39, 0, %s38
      %s41 = ssub.s32 %s28, %s40
      %p42 = scmp.eq.s32.totalorder %s41, 0
      %s44 = sadd.s32 %s43, 1
      %s45 = scalar_select %p42, %s43, %s44
      %p48 = pneg %p42
      %p49 = scmp.eq.s32.totalorder %s21, 1
      %p50 = por %p48, %p49
      %p51 = scmp.ne.s32.totalorder %s43, %s46
      %p52 = scmp.eq.s32.totalorder %s21, 0
      %p53 = por %p51, %p52
      %p54 = scmp.ne.s32.totalorder %s43, %s46
      %p55 = scmp.eq.s32.totalorder %s26, 1
      %p56 = por %p54, %p55
      %p57 = scmp.ne.s32.totalorder %s46, %s47
      %p58 = scmp.eq.s32.totalorder %s26, 0
      %p59 = por %p57, %p58
      %p60 = scmp.ne.s32.totalorder %s46, %s47
      %p61 = scmp.eq.s32.totalorder %s27, 1
      %p62 = por %p60, %p61
      %p64 = scmp.ne.s32.totalorder %s47, %s63
      %p65 = scmp.eq.s32.totalorder %s27, 0
      %p66 = por %p64, %p65
      %s67 = ssub.s32 %s29, %s36
      %p68 = scmp.eq.s32.totalorder %s67, 0
      %s70 = sadd.s32 %s69, 1
      %s71 = scalar_select %p68, %s69, %s70
      %p74 = pneg %p68
      %p75 = scmp.eq.s32.totalorder %s21, 1
      %p76 = por %p74, %p75
      %p77 = scmp.ne.s32.totalorder %s69, %s72
      %p78 = scmp.eq.s32.totalorder %s21, 0
      %p79 = por %p77, %p78
      %p80 = scmp.ne.s32.totalorder %s69, %s72
      %p81 = scmp.eq.s32.totalorder %s26, 1
      %p82 = por %p80, %p81
      %p83 = scmp.ne.s32.totalorder %s72, %s73
      %p84 = scmp.eq.s32.totalorder %s26, 0
      %p85 = por %p83, %p84
      %p86 = scmp.ne.s32.totalorder %s72, %s73
      %p87 = scmp.eq.s32.totalorder %s27, 1
      %p88 = por %p86, %p87
      %p90 = scmp.ne.s32.totalorder %s73, %s89
      %p91 = scmp.eq.s32.totalorder %s27, 0
      %p92 = por %p90, %p91
      %s93 = ssub.s32 %s29, %s36
      %p94 = scmp.eq.s32.totalorder %s93, 0
      %s96 = sadd.s32 %s95, 1
      %s97 = scalar_select %p94, %s95, %s96
      %p100 = pneg %p94
      %p101 = scmp.eq.s32.totalorder %s21, 1
      %p102 = por %p100, %p101
      %p103 = scmp.ne.s32.totalorder %s95, %s98
      %p104 = scmp.eq.s32.totalorder %s21, 0
      %p105 = por %p103, %p104
      %p106 = scmp.ne.s32.totalorder %s95, %s98
      %p107 = scmp.eq.s32.totalorder %s26, 1
      %p108 = por %p106, %p107
      %p109 = scmp.ne.s32.totalorder %s98, %s99
      %p110 = scmp.eq.s32.totalorder %s26, 0
      %p111 = por %p109, %p110
      %p112 = scmp.ne.s32.totalorder %s98, %s99
      %p113 = scmp.eq.s32.totalorder %s27, 1
      %p114 = por %p112, %p113
      %p116 = scmp.ne.s32.totalorder %s99, %s115
      %p117 = scmp.eq.s32.totalorder %s27, 0
      %p118 = por %p116, %p117
      %s119 = ssub.s32 %s29, %s36
      %p120 = scmp.eq.s32.totalorder %s119, 0
      %s122 = sadd.s32 %s121, 1
      %s123 = scalar_select %p120, %s121, %s122
      %p126 = pneg %p120
      %p127 = scmp.eq.s32.totalorder %s21, 1
      %p128 = por %p126, %p127
      %p129 = scmp.ne.s32.totalorder %s121, %s124
      %p130 = scmp.eq.s32.totalorder %s21, 0
      %p131 = por %p129, %p130
      %p132 = scmp.ne.s32.totalorder %s121, %s124
      %p133 = scmp.eq.s32.totalorder %s26, 1
      %p134 = por %p132, %p133
      %p135 = scmp.ne.s32.totalorder %s124, %s125
      %p136 = scmp.eq.s32.totalorder %s26, 0
      %p137 = por %p135, %p136
      %p138 = scmp.ne.s32.totalorder %s124, %s125
      %p139 = scmp.eq.s32.totalorder %s27, 1
      %p140 = por %p138, %p139
      %p142 = scmp.ne.s32.totalorder %s125, %s141
      %p143 = scmp.eq.s32.totalorder %s27, 0
      %p144 = por %p142, %p143
      %s146 = sadd.s32 %s145, 1
      %p149 = scmp.eq.s32.totalorder %s21, 1
      %p150 = scmp.ne.s32.totalorder %s145, %s147
      %p151 = scmp.eq.s32.totalorder %s21, 0
      %p152 = por %p150, %p151
      %p153 = scmp.ne.s32.totalorder %s145, %s147
      %p154 = scmp.eq.s32.totalorder %s26, 1
      %p155 = por %p153, %p154
      %p156 = scmp.ne.s32.totalorder %s147, %s148
      %p157 = scmp.eq.s32.totalorder %s26, 0
      %p158 = por %p156, %p157
      %p159 = scmp.ne.s32.totalorder %s147, %s148
      %p160 = scmp.eq.s32.totalorder %s27, 1
      %p161 = por %p159, %p160
      %p163 = scmp.ne.s32.totalorder %s148, %s162
      %p164 = scmp.eq.s32.totalorder %s27, 0
      %p165 = por %p163, %p164
      %s166 = ssub.s32 %s28, %s40
      %p167 = scmp.eq.s32.totalorder %s166, 0
      %s169 = sadd.s32 %s168, 1
      %s170 = scalar_select %p167, %s168, %s169
      %p173 = pneg %p167
      %p174 = scmp.eq.s32.totalorder %s21, 1
      %p175 = por %p173, %p174
      %p176 = scmp.ne.s32.totalorder %s168, %s171
      %p177 = scmp.eq.s32.totalorder %s21, 0
      %p178 = por %p176, %p177
      %p179 = scmp.ne.s32.totalorder %s168, %s171
      %p180 = scmp.eq.s32.totalorder %s26, 1
      %p181 = por %p179, %p180
      %p182 = scmp.ne.s32.totalorder %s171, %s172
      %p183 = scmp.eq.s32.totalorder %s26, 0
      %p184 = por %p182, %p183
      %p185 = scmp.ne.s32.totalorder %s171, %s172
      %p186 = scmp.eq.s32.totalorder %s27, 1
      %p187 = por %p185, %p186
      %p189 = scmp.ne.s32.totalorder %s172, %s188
      %p190 = scmp.eq.s32.totalorder %s27, 0
      %p191 = por %p189, %p190
      %p192 = scmp.le.s32.totalorder 1, %s21
      %p193 = scmp.lt.s32.totalorder %s21, 3
      %p194 = pnand %p192, %p193
      %p195 = pneg %p194
      // Predicated region
      $region9: #{tpu_custom_call.1} parent=5 // pred_check
        _
      $region10: #{tpu_custom_call.1} parent=5 // pred_check_branch
        %197 = sbr.rel (%p194) target = $region12
      $region11: #{tpu_custom_call.1} parent=5 // pred_region
        %s198 = ssub.s32 %s21, 1
        // Predicated region
        $region13: #{tpu_custom_call.1} parent=11 // pred_check
          %p199 = pneg %p85
        $region14: #{tpu_custom_call.1} parent=11 // pred_check_branch
          %201 = sbr.rel (%p199) target = $region16
        $region15: #{tpu_custom_call.1} parent=11 // pred_region
          %s202 = smul.u32 2, %s31
          %s204 = ssub.s32 2048, 2048
          %205 = vsyncadd [#allocation9], %s204
          %s206 = smul.addr %s202, 128
          %s207 = scalar_lea.hbm %s2, %s206
          %s208 = sshll.u32 [#allocation8], 4
          %s209 = int_to_ptr.vmem [resolvable:$true] %s208
          %214 = dma.hbm_to_vmem [thread:$0]  %s207, 2048, %s209, [#allocation9], 256, 256, 16
        $region16: #{tpu_custom_call.1} parent=11 // pred_fallthru
          _
        // Predicated region
        $region17: #{tpu_custom_call.1} parent=11 // pred_check
          %p215 = pneg %p111
        $region18: #{tpu_custom_call.1} parent=11 // pred_check_branch
          %217 = sbr.rel (%p215) target = $region20
        $region19: #{tpu_custom_call.1} parent=11 // pred_region
          %s218 = smul.u32 2, %s31
          %s220 = ssub.s32 32, 32
          %221 = vsyncadd [#allocation9], %s220
          %s222 = smul.addr %s218, 16
          %s223 = scalar_lea.hbm %s3, %s222
          %s225 = sshll.u32 [#allocation10], 4
          %s226 = int_to_ptr.vmem [resolvable:$true] %s225
          %228 = dma.hbm_to_vmem [thread:$0]  %s223, 32, %s226, [#allocation9]
        $region20: #{tpu_custom_call.1} parent=11 // pred_fallthru
          _
        // Predicated region
        $region21: #{tpu_custom_call.1} parent=11 // pred_check
          %p229 = pneg %p137
        $region22: #{tpu_custom_call.1} parent=11 // pred_check_branch
          %231 = sbr.rel (%p229) target = $region24
        $region23: #{tpu_custom_call.1} parent=11 // pred_region
          %s232 = smul.u32 32, %s31
          %s234 = ssub.s32 4096, 4096
          %235 = vsyncadd [#allocation12], %s234
          %s236 = smul.addr %s232, 128
          %s237 = scalar_lea.hbm %s4, %s236
          %s238 = sshll.u32 [#allocation11], 4
          %s239 = int_to_ptr.vmem [resolvable:$true] %s238
          %244 = dma.hbm_to_vmem [thread:$0]  %s237, 4096, %s239, [#allocation12], 128, 128, 8
        $region24: #{tpu_custom_call.1} parent=11 // pred_fallthru
          _
        // Predicated region
        $region25: #{tpu_custom_call.1} parent=11 // pred_check
          %p245 = pneg %p158
        $region26: #{tpu_custom_call.1} parent=11 // pred_check_branch
          %247 = sbr.rel (%p245) target = $region28
        $region27: #{tpu_custom_call.1} parent=11 // pred_region
          %s249 = ssub.s32 16, 16
          %250 = vsyncadd [#allocation12], %s249
          %s252 = sshll.u32 [#allocation13], 4
          %s253 = int_to_ptr.vmem [resolvable:$true] %s252
          %255 = dma.hbm_to_vmem [thread:$0]  %s5, 16, %s253, [#allocation12]
        $region28: #{tpu_custom_call.1} parent=11 // pred_fallthru
          _
      $region12: #{tpu_custom_call.1} parent=5 // pred_fallthru
        _
      %p256 = scmp.lt.s32.totalorder %s21, 2
      // Predicated region
      $region29: #{tpu_custom_call.1} parent=5 // pred_check
        %p257 = pneg %p256
      $region30: #{tpu_custom_call.1} parent=5 // pred_check_branch
        %259 = sbr.rel (%p257) target = $region32
      $region31: #{tpu_custom_call.1} parent=5 // pred_region
        // Predicated region
        $region33: #{tpu_custom_call.1} parent=31 // pred_check
          %p260 = pneg %p53
        $region34: #{tpu_custom_call.1} parent=31 // pred_check_branch
          %262 = sbr.rel (%p260) target = $region36
        $region35: #{tpu_custom_call.1} parent=31 // pred_region
          %s263 = sand.u32 %s43, 1
          %s264 = scalar_lea.sflag [#allocation6], %s263
          %s265 = sand.u32 %s43, 1
          %s266 = smul.addr %s265, 8
          %s267 = scalar_lea.vmem [#allocation5], %s266
          %s269 = ssub.s32 128, 128
          %270 = vsyncadd %s264, %s269
          %s271 = smul.addr %s28, 128
          %s272 = scalar_lea.hbm %s1, %s271
          %s274 = sshll.u32 %s267, 4
          %s275 = int_to_ptr.vmem [resolvable:$true] %s274
          %277 = dma.hbm_to_vmem [thread:$0]  %s272, 128, %s275, %s264
        $region36: #{tpu_custom_call.1} parent=31 // pred_fallthru
          _
      $region32: #{tpu_custom_call.1} parent=5 // pred_fallthru
        _
      %p278 = scmp.le.s32.totalorder 1, %s21
      %p279 = scmp.lt.s32.totalorder %s21, 3
      %p280 = pnand %p278, %p279
      %p281 = pneg %p280
      // Predicated region
      $region37: #{tpu_custom_call.1} parent=5 // pred_check
        _
      $region38: #{tpu_custom_call.1} parent=5 // pred_check_branch
        %283 = sbr.rel (%p280) target = $region40
      $region39: #{tpu_custom_call.1} parent=5 // pred_region
        %s284 = ssub.s32 %s21, 1
        %s285 = sand.u32 %s46, 1
        %s286 = scalar_lea.sflag [#allocation6], %s285
        %s287 = sand.u32 %s46, 1
        %s288 = smul.addr %s287, 8
        %s289 = scalar_lea.vmem [#allocation5], %s288
        // Predicated region
        $region41: #{tpu_custom_call.1} parent=39 // pred_check
          %p290 = pneg %p59
        $region42: #{tpu_custom_call.1} parent=39 // pred_check_branch
          %292 = sbr.rel (%p290) target = $region44
        $region43: #{tpu_custom_call.1} parent=39 // pred_region
          %293 = dma.done %s286, 128
        $region44: #{tpu_custom_call.1} parent=39 // pred_fallthru
          _
        // Predicated region
        $region45: #{tpu_custom_call.1} parent=39 // pred_check
          %p294 = pneg %p85
        $region46: #{tpu_custom_call.1} parent=39 // pred_check_branch
          %296 = sbr.rel (%p294) target = $region48
        $region47: #{tpu_custom_call.1} parent=39 // pred_region
          %297 = dma.done [#allocation9], 2048
        $region48: #{tpu_custom_call.1} parent=39 // pred_fallthru
          _
        // Predicated region
        $region49: #{tpu_custom_call.1} parent=39 // pred_check
          %p298 = pneg %p111
        $region50: #{tpu_custom_call.1} parent=39 // pred_check_branch
          %300 = sbr.rel (%p298) target = $region52
        $region51: #{tpu_custom_call.1} parent=39 // pred_region
          %301 = dma.done [#allocation9], 32
        $region52: #{tpu_custom_call.1} parent=39 // pred_fallthru
          _
        // Predicated region
        $region53: #{tpu_custom_call.1} parent=39 // pred_check
          %p302 = pneg %p137
        $region54: #{tpu_custom_call.1} parent=39 // pred_check_branch
          %304 = sbr.rel (%p302) target = $region56
        $region55: #{tpu_custom_call.1} parent=39 // pred_region
          %305 = dma.done [#allocation12], 4096
        $region56: #{tpu_custom_call.1} parent=39 // pred_fallthru
          _
        // Predicated region
        $region57: #{tpu_custom_call.1} parent=39 // pred_check
          %p306 = pneg %p158
        $region58: #{tpu_custom_call.1} parent=39 // pred_check_branch
          %308 = sbr.rel (%p306) target = $region60
        $region59: #{tpu_custom_call.1} parent=39 // pred_region
          %309 = dma.done [#allocation12], 16
        $region60: #{tpu_custom_call.1} parent=39 // pred_fallthru
          _
        %s310 = sand.u32 %s46, 1
        %s311 = scalar_lea.sflag [#allocation6], %s310
        %s312 = sand.u32 %s46, 1
        %s313 = smul.addr %s312, 8
        %s314 = scalar_lea.vmem [#allocation5], %s313
        %p315 = pneg %p59
        %p316 = pneg %p56
        %p317 = pneg %p85
        %p318 = pneg %p82
        %p319 = pneg %p111
        %p320 = pneg %p108
        %p321 = pneg %p137
        %p322 = pneg %p134
        %p323 = pneg %p158
        %p324 = pneg %p155
        %p325 = pneg %p184
        %p326 = pneg %p181
        %s327 = sand.u32 %s171, 1
        %s328 = scalar_lea.sflag [#allocation7], %s327
        %s329 = sand.u32 %s171, 1
        %s330 = smul.addr %s329, 8
        %s331 = scalar_lea.vmem [#allocation14], %s330
        %s332 = smul.u32 2, %s31
        %s333 = smul.u32 2, %s31
        %s334 = smul.u32 32, %s31
        %p335 = scmp.eq.s32.totalorder %s31, 0
        // Predicated region
        $region61: #{tpu_custom_call.1} parent=39 // pred_check
          %p336 = pneg %p335
        $region62: #{tpu_custom_call.1} parent=39 // pred_check_branch
          %338 = sbr.rel (%p336) target = $region64
        $region63: #{tpu_custom_call.1} parent=39 // pred_region
          %vm339 = vcmask 523264
          %340 = vst.msk [vmem:[#allocation2] sm:$0xff] %vm339, 0.0
        $region64: #{tpu_custom_call.1} parent=39 // pred_fallthru
          _
        %v341 = vld [vmem:[%s289] sm:$0xff]
        %v342 = vld [vmem:[#allocation8] sm:$0xff]
        %v343 = vld [vmem:[#allocation8 + $0x8] sm:$0xff]
        %v344 = vld [vmem:[#allocation8 + $0x10] sm:$0xff]
        %v345 = vld [vmem:[#allocation8 + $0x18] sm:$0xff]
        %v346 = vld [vmem:[#allocation8 + $0x20] sm:$0xff]
        %v347 = vld [vmem:[#allocation8 + $0x28] sm:$0xff]
        %v348 = vld [vmem:[#allocation8 + $0x30] sm:$0xff]
        %v349 = vld [vmem:[#allocation8 + $0x38] sm:$0xff]
        %v350 = vld [vmem:[#allocation8 + $0x40] sm:$0xff]
        %v351 = vld [vmem:[#allocation8 + $0x48] sm:$0xff]
        %v352 = vld [vmem:[#allocation8 + $0x50] sm:$0xff]
        %v353 = vld [vmem:[#allocation8 + $0x58] sm:$0xff]
        %v354 = vld [vmem:[#allocation8 + $0x60] sm:$0xff]
        %v355 = vld [vmem:[#allocation8 + $0x68] sm:$0xff]
        %v356 = vld [vmem:[#allocation8 + $0x70] sm:$0xff]
        %v357 = vld [vmem:[#allocation8 + $0x78] sm:$0xff]
        %v358 = vld [vmem:[#allocation10] sm:$0x3]
        %v360 = vlaneseq
        %v361 = vshrl.u32 %v360, 7
        %v362 = vsub.s32 0, %v361
        %v363 = vrot.slane %v358, %v362
        %v364 = vlaneseq
        %v365 = vshrl.u32 %v364, 7
        %v366 = vsub.s32 1, %v365
        %v367 = vrot.slane %v358, %v366
        %vm370 = vcmask 523264
        %v372 = vsel %vm370, %v341, 0
        %374 = vmatprep.subr.mxu0 %v343
        %375 = vmatpush1.msra.mxu0 %v342
        %376 = vmatprep.subr.mxu0 %v345
        %377 = vmatpush1.msra.mxu0 %v344
        %378 = vmatprep.subr.mxu0 %v347
        %379 = vmatpush1.msra.mxu0 %v346
        %380 = vmatprep.subr.mxu0 %v349
        %381 = vmatpush1.msra.mxu0 %v348
        %382 = vmatprep.subr.mxu0 %v351
        %383 = vmatpush1.msra.mxu0 %v350
        %384 = vmatprep.subr.mxu0 %v353
        %385 = vmatpush1.msra.mxu0 %v352
        %386 = vmatprep.subr.mxu0 %v355
        %387 = vmatpush1.msra.mxu0 %v354
        %388 = vmatprep.subr.mxu0 %v357
        %389 = vmatpush1.msra.mxu0 %v356
        %390 = vmatprep.subr.mxu0 0.0
        %391 = vmatpush1.msra.mxu0 0.0
        %392 = vmatprep.subr.mxu0 0.0
        %393 = vmatpush1.msra.mxu0 0.0
        %394 = vmatprep.subr.mxu0 0.0
        %395 = vmatpush1.msra.mxu0 0.0
        %396 = vmatprep.subr.mxu0 0.0
        %397 = vmatpush1.msra.mxu0 0.0
        %398 = vmatprep.subr.mxu0 0.0
        %399 = vmatpush1.msra.mxu0 0.0
        %400 = vmatprep.subr.mxu0 0.0
        %401 = vmatpush1.msra.mxu0 0.0
        %402 = vmatprep.subr.mxu0 0.0
        %403 = vmatpush1.msra.mxu0 0.0
        %404 = vmatprep.subr.mxu0 0.0
        %405 = vmatpush1.msra.mxu0 0.0
        %406 = vmatprep.subr.mxu0 0.0
        %407 = vmatpush1.msra.mxu0 0.0
        %408 = vmatprep.subr.mxu0 0.0
        %409 = vmatpush1.msra.mxu0 0.0
        %410 = vmatprep.subr.mxu0 0.0
        %411 = vmatpush1.msra.mxu0 0.0
        %412 = vmatprep.subr.mxu0 0.0
        %413 = vmatpush1.msra.mxu0 0.0
        %414 = vmatprep.subr.mxu0 0.0
        %415 = vmatpush1.msra.mxu0 0.0
        %416 = vmatprep.subr.mxu0 0.0
        %417 = vmatpush1.msra.mxu0 0.0
        %418 = vmatprep.subr.mxu0 0.0
        %419 = vmatpush1.msra.mxu0 0.0
        %420 = vmatprep.subr.mxu0 0.0
        %421 = vmatpush1.msra.mxu0 0.0
        %422 = vmatprep.subr.mxu0 0.0
        %423 = vmatpush1.msra.mxu0 0.0
        %424 = vmatprep.subr.mxu0 0.0
        %425 = vmatpush1.msra.mxu0 0.0
        %426 = vmatprep.subr.mxu0 0.0
        %427 = vmatpush1.msra.mxu0 0.0
        %428 = vmatprep.subr.mxu0 0.0
        %429 = vmatpush1.msra.mxu0 0.0
        %430 = vmatprep.subr.mxu0 0.0
        %431 = vmatpush1.msra.mxu0 0.0
        %432 = vmatprep.subr.mxu0 0.0
        %433 = vmatpush1.msra.mxu0 0.0
        %434 = vmatprep.subr.mxu0 0.0
        %435 = vmatpush1.msra.mxu0 0.0
        %436 = vmatprep.subr.mxu0 0.0
        %437 = vmatpush1.msra.mxu0 0.0
        %438 = vmatprep.mubr.f32.mxu0 0.0
        %439 = vmatmul.mubr.f32.gmra.mrb[0].mxu0 %v372
        %v440 = vpop.f32.mrb[0].mxu0
        %v441 = vadd.f32 %v363, %v440
        %v442 = vpop.f32.mrb[0].mxu0
        %v443 = vadd.f32 %v367, %v442
        %444 = vdwg.mxu0
        %v445 = vmul.f32 %v441, 0.5
        %v446 = vmul.f32 %v443, 0.5
        %v447 = vmul.f32 %v441, 0.70710677
        %v448 = vmul.f32 %v443, 0.70710677
        %v449 = verf.f32.pop %v447
        %v450 = verf.f32.pop %v448
        %v451 = vadd.f32 %v449, 1.0
        %v452 = vadd.f32 %v450, 1.0
        %v453 = vmul.f32 %v445, %v451
        %v454 = vmul.f32 %v446, %v452
        %v455 = vld [vmem:[#allocation2] sm:$0xff]
        %v456 = vld [vmem:[#allocation11] sm:$0xff]
        %v457 = vld [vmem:[#allocation11 + $0x8] sm:$0xff]
        %v458 = vld [vmem:[#allocation11 + $0x10] sm:$0xff]
        %v459 = vld [vmem:[#allocation11 + $0x18] sm:$0xff]
        %v460 = vld [vmem:[#allocation11 + $0x20] sm:$0xff]
        %v461 = vld [vmem:[#allocation11 + $0x28] sm:$0xff]
        %v462 = vld [vmem:[#allocation11 + $0x30] sm:$0xff]
        %v463 = vld [vmem:[#allocation11 + $0x38] sm:$0xff]
        %v464 = vld [vmem:[#allocation11 + $0x40] sm:$0xff]
        %v465 = vld [vmem:[#allocation11 + $0x48] sm:$0xff]
        %v466 = vld [vmem:[#allocation11 + $0x50] sm:$0xff]
        %v467 = vld [vmem:[#allocation11 + $0x58] sm:$0xff]
        %v468 = vld [vmem:[#allocation11 + $0x60] sm:$0xff]
        %v469 = vld [vmem:[#allocation11 + $0x68] sm:$0xff]
        %v470 = vld [vmem:[#allocation11 + $0x70] sm:$0xff]
        %v471 = vld [vmem:[#allocation11 + $0x78] sm:$0xff]
        %v472 = vld [vmem:[#allocation11 + $0x80] sm:$0xff]
        %v473 = vld [vmem:[#allocation11 + $0x88] sm:$0xff]
        %v474 = vld [vmem:[#allocation11 + $0x90] sm:$0xff]
        %v475 = vld [vmem:[#allocation11 + $0x98] sm:$0xff]
        %v476 = vld [vmem:[#allocation11 + $0xa0] sm:$0xff]
        %v477 = vld [vmem:[#allocation11 + $0xa8] sm:$0xff]
        %v478 = vld [vmem:[#allocation11 + $0xb0] sm:$0xff]
        %v479 = vld [vmem:[#allocation11 + $0xb8] sm:$0xff]
        %v480 = vld [vmem:[#allocation11 + $0xc0] sm:$0xff]
        %v481 = vld [vmem:[#allocation11 + $0xc8] sm:$0xff]
        %v482 = vld [vmem:[#allocation11 + $0xd0] sm:$0xff]
        %v483 = vld [vmem:[#allocation11 + $0xd8] sm:$0xff]
        %v484 = vld [vmem:[#allocation11 + $0xe0] sm:$0xff]
        %v485 = vld [vmem:[#allocation11 + $0xe8] sm:$0xff]
        %v486 = vld [vmem:[#allocation11 + $0xf0] sm:$0xff]
        %v487 = vld [vmem:[#allocation11 + $0xf8] sm:$0xff]
        %488 = vmatprep.subr.mxu0 0.0
        %489 = vmatpush1.msra.mxu0 %v456
        %490 = vmatprep.subr.mxu0 0.0
        %491 = vmatpush1.msra.mxu0 %v457
        %492 = vmatprep.subr.mxu0 0.0
        %493 = vmatpush1.msra.mxu0 %v458
        %494 = vmatprep.subr.mxu0 0.0
        %495 = vmatpush1.msra.mxu0 %v459
        %496 = vmatprep.subr.mxu0 0.0
        %497 = vmatpush1.msra.mxu0 %v460
        %498 = vmatprep.subr.mxu0 0.0
        %499 = vmatpush1.msra.mxu0 %v461
        %500 = vmatprep.subr.mxu0 0.0
        %501 = vmatpush1.msra.mxu0 %v462
        %502 = vmatprep.subr.mxu0 0.0
        %503 = vmatpush1.msra.mxu0 %v463
        %504 = vmatprep.subr.mxu0 0.0
        %505 = vmatpush1.msra.mxu0 %v464
        %506 = vmatprep.subr.mxu0 0.0
        %507 = vmatpush1.msra.mxu0 %v465
        %508 = vmatprep.subr.mxu0 0.0
        %509 = vmatpush1.msra.mxu0 %v466
        %510 = vmatprep.subr.mxu0 0.0
        %511 = vmatpush1.msra.mxu0 %v467
        %512 = vmatprep.subr.mxu0 0.0
        %513 = vmatpush1.msra.mxu0 %v468
        %514 = vmatprep.subr.mxu0 0.0
        %515 = vmatpush1.msra.mxu0 %v469
        %516 = vmatprep.subr.mxu0 0.0
        %517 = vmatpush1.msra.mxu0 %v470
        %518 = vmatprep.subr.mxu0 0.0
        %519 = vmatpush1.msra.mxu0 %v471
        %520 = vmatprep.subr.mxu0 0.0
        %521 = vmatpush1.msra.mxu0 %v472
        %522 = vmatprep.subr.mxu0 0.0
        %523 = vmatpush1.msra.mxu0 %v473
        %524 = vmatprep.subr.mxu0 0.0
        %525 = vmatpush1.msra.mxu0 %v474
        %526 = vmatprep.subr.mxu0 0.0
        %527 = vmatpush1.msra.mxu0 %v475
        %528 = vmatprep.subr.mxu0 0.0
        %529 = vmatpush1.msra.mxu0 %v476
        %530 = vmatprep.subr.mxu0 0.0
        %531 = vmatpush1.msra.mxu0 %v477
        %532 = vmatprep.subr.mxu0 0.0
        %533 = vmatpush1.msra.mxu0 %v478
        %534 = vmatprep.subr.mxu0 0.0
        %535 = vmatpush1.msra.mxu0 %v479
        %536 = vmatprep.subr.mxu0 0.0
        %537 = vmatpush1.msra.mxu0 %v480
        %538 = vmatprep.subr.mxu0 0.0
        %539 = vmatpush1.msra.mxu0 %v481
        %540 = vmatprep.subr.mxu0 0.0
        %541 = vmatpush1.msra.mxu0 %v482
        %542 = vmatprep.subr.mxu0 0.0
        %543 = vmatpush1.msra.mxu0 %v483
        %544 = vmatprep.subr.mxu0 0.0
        %545 = vmatpush1.msra.mxu0 %v484
        %546 = vmatprep.subr.mxu0 0.0
        %547 = vmatpush1.msra.mxu0 %v485
        %548 = vmatprep.subr.mxu0 0.0
        %549 = vmatpush1.msra.mxu0 %v486
        %550 = vmatprep.subr.mxu0 0.0
        %551 = vmatpush1.msra.mxu0 %v487
        %552 = vmatprep.mubr.f32.mxu0 %v454
        %553 = vmatmul.mubr.f32.gmra.mrb[0].mxu0 %v453
        %v554 = vpop.f32.mrb[0].mxu0
        %v555 = vadd.f32 0.0, %v554
        %v556 = vpop.f32.mrb[0].mxu0
        %557 = vdwg.mxu0
        %v558 = vadd.f32 %v455, %v555
        %559 = vst.msk [vmem:[#allocation2] sm:$0xff] %vm370, %v558
        // Predicated region
        $region65: #{tpu_custom_call.1} parent=39 // pred_check
          %p560 = pneg %p335
        $region66: #{tpu_custom_call.1} parent=39 // pred_check_branch
          %562 = sbr.rel (%p560) target = $region68
        $region67: #{tpu_custom_call.1} parent=39 // pred_region
          %v563 = vld [vmem:[#allocation2] sm:$0xff]
          %v564 = vld [vmem:[#allocation13] sm:$0x1]
          %v566 = vlaneseq
          %v567 = vshrl.u32 %v566, 7
          %v568 = vsub.s32 0, %v567
          %v569 = vrot.slane %v564, %v568
          %v571 = vadd.f32 %v563, %v569
          %572 = vst.msk [vmem:[%s331] sm:$0xff] %vm370, %v571
        $region68: #{tpu_custom_call.1} parent=39 // pred_fallthru
          _
        %s573 = sand.u32 %s171, 1
        %s574 = scalar_lea.sflag [#allocation7], %s573
        %s575 = sand.u32 %s171, 1
        %s576 = smul.addr %s575, 8
        %s577 = scalar_lea.vmem [#allocation14], %s576
        // Predicated region
        $region69: #{tpu_custom_call.1} parent=39 // pred_check
          %p578 = pneg %p181
        $region70: #{tpu_custom_call.1} parent=39 // pred_check_branch
          %580 = sbr.rel (%p578) target = $region72
        $region71: #{tpu_custom_call.1} parent=39 // pred_region
          %s582 = ssub.s32 128, 128
          %583 = vsyncadd %s574, %s582
          %s584 = smul.addr %s30, 128
          %s585 = scalar_lea.hbm %s6, %s584
          %s587 = sshll.u32 %s577, 4
          %s588 = int_to_ptr.vmem [resolvable:$true] %s587
          %590 = dma.vmem_to_hbm [thread:$0]  %s588, 128, %s585, %s574
        $region72: #{tpu_custom_call.1} parent=39 // pred_fallthru
          _
      $region40: #{tpu_custom_call.1} parent=5 // pred_fallthru
        _
      %p591 = scmp.le.s32.totalorder 2, %s21
      // Predicated region
      $region73: #{tpu_custom_call.1} parent=5 // pred_check
        %p592 = pneg %p591
      $region74: #{tpu_custom_call.1} parent=5 // pred_check_branch
        %594 = sbr.rel (%p592) target = $region76
      $region75: #{tpu_custom_call.1} parent=5 // pred_region
        %s595 = ssub.s32 %s21, 2
        // Predicated region
        $region77: #{tpu_custom_call.1} parent=75 // pred_check
          %p596 = pneg %p187
        $region78: #{tpu_custom_call.1} parent=75 // pred_check_branch
          %598 = sbr.rel (%p596) target = $region80
        $region79: #{tpu_custom_call.1} parent=75 // pred_region
          %s599 = sand.u32 %s172, 1
          %s600 = scalar_lea.sflag [#allocation7], %s599
          %s601 = sand.u32 %s172, 1
          %s602 = smul.addr %s601, 8
          %s603 = scalar_lea.vmem [#allocation14], %s602
          %604 = dma.done %s600, 128
        $region80: #{tpu_custom_call.1} parent=75 // pred_fallthru
          _
      $region76: #{tpu_custom_call.1} parent=5 // pred_fallthru
        _
    $region6: #{tpu_custom_call.1} parent=1 // loop_footer
      %s25 = sadd.s32 1, %s21
    $region7: #{tpu_custom_call.1} parent=1 // loop_footer_branch
      %20 = sbr.rel target = $region3
    $region8: #{tpu_custom_call.1} parent=1 // loop_exit
      _
    %605 = vsyncpa [#allocation6], 1
    %s606 = scalar_lea.sflag [#allocation6], 1
    %607 = vsyncpa %s606, 1
    %608 = vsyncpa [#allocation9], 1
    %609 = vsyncpa [#allocation12], 1
    %610 = vsyncpa [#allocation7], 1
    %s611 = scalar_lea.sflag [#allocation7], 1
    %612 = vsyncpa %s611, 1

</llo_original>
